<compile_context>
chip_gen: v7x
topology: tpu7x:2x2x1
jax: 0.10.0
libtpu: 0.0.40
codegen_flags: <defaults>
</compile_context>

<pallas_src>
import functools
import numpy as np
import jax
import jax.numpy as jnp
from jax import lax
from jax.experimental import pallas as pl
from jax.experimental.pallas import tpu as pltpu

# ---------------- problem sizes (node_dims = (NS, NV), edge_dims = (ES, EV)) --
NS, NV = 16, 4
ES, EV = 8, 2
N_NODES = 16
N_EDGES = 32

S_IN = 2 * NS + ES            # scalar width of concatenated message input
V_IN = 2 * NV + EV            # vector width of concatenated message input
H_M0 = max(V_IN, NV)          # GVP hidden vector dims
H_M = NV
HID_S, HID_V = 4 * NS, 2 * NV
H_F0 = max(NV, HID_V)
H_F1 = max(HID_V, NV)

EPS_NORM = 1e-8               # _norm_no_nan clamp
EPS_LN = 1e-5                 # nn.LayerNorm eps

OUT_USED = NS + 3 * NV        # useful output lanes per node
OUT_COLS = 128                # lane-dense output slab width (unmasked vst)

# (prefix, si, vi, so, vo, h) for the 5 GVPs in execution order.
GVP_SPECS = (
    ("m0_", S_IN, V_IN, NS, NV, H_M0),
    ("m1_", NS, NV, NS, NV, H_M),
    ("m2_", NS, NV, NS, NV, H_M),
    ("f0_", NS, NV, HID_S, HID_V, H_F0),
    ("f1_", HID_S, HID_V, NS, NV, H_F1),
)


# ------------------ static packed-buffer layouts (computed once) ----------------
def _build_w_layout():
    """bf16 matmul-weight buffer: each entry in a 16-row-aligned block."""
    off, row, cols = {}, 0, 0
    for p, si, vi, so, vo, h in GVP_SPECS:
        for name, r, c in ((p + "wh", vi, h),
                           (p + "ws", si + h, so),     # fused: concat([s, vn]) @ ws
                           (p + "wv", h, vo)):
            off[name] = (row, r, c)
            row += -(-r // 16) * 16
            cols = max(cols, c)
    return off, row, cols


def _build_b_layout():
    """f32 bias / LayerNorm buffer: one row per entry."""
    entries = [(p + "b", so) for p, _, _, so, _, _ in GVP_SPECS]
    entries += [("ln0_w", NS), ("ln0_b", NS), ("ln1_w", NS), ("ln1_b", NS)]
    off = {name: (i, c) for i, (name, c) in enumerate(entries)}
    return off, len(entries), max(c for _, c in entries)


W_OFF, W_ROWS, W_COLS = _build_w_layout()
B_OFF, B_ROWS, B_COLS = _build_b_layout()


def pack_params(params):
    """Host-side, call ONCE after init (not in the per-call path).
    Returns (w_bf16 [W_ROWS, W_COLS], b_f32 [B_ROWS, B_COLS])."""
    w = np.zeros((W_ROWS, W_COLS), np.float32)
    b = np.zeros((B_ROWS, B_COLS), np.float32)
    for p, si, vi, so, vo, h in GVP_SPECS:
        wh, ws_w, ws_b, wv = params[p[:-1]]
        for name, mat in ((p + "wh", np.asarray(wh).T),      # [vi, h]
                          (p + "ws", np.asarray(ws_w).T),     # [si+h, so]
                          (p + "wv", np.asarray(wv).T)):      # [h, vo]
            r0, r, c = W_OFF[name]
            w[r0:r0 + r, 0:c] = mat
        i, c = B_OFF[p + "b"]
        b[i, 0:c] = np.asarray(ws_b).reshape(-1)
    for ln in ("ln0", "ln1"):
        wln, bln = params[ln]
        i, c = B_OFF[ln + "_w"]; b[i, 0:c] = np.asarray(wln).reshape(-1)
        i, c = B_OFF[ln + "_b"]; b[i, 0:c] = np.asarray(bln).reshape(-1)
    return jnp.asarray(w, jnp.bfloat16), jnp.asarray(b, jnp.float32)


# ------------------------------- fused kernel ---------------------------------
def _fused_kernel(edge_ref, node_ref, a_ref, deg_ref, w_ref, b_ref, out_ref, *, n, e):
    def get_w(name):
        r0, r, c = W_OFF[name]            # static offsets -> static slices (bf16)
        return w_ref[r0:r0 + r, 0:c]

    def get_b(name):
        i, c = B_OFF[name]                # [1, c] f32
        return b_ref[i:i + 1, 0:c]

    def mm(a, b):                         # bf16 operands, f32 accumulation (MXU)
        return jnp.dot(a.astype(jnp.bfloat16), b.astype(jnp.bfloat16),
                       preferred_element_type=jnp.float32)

    def split3(x, rows):
        return x[0:rows], x[rows:2 * rows], x[2 * rows:3 * rows]

    def bcast3(v2d, fac, rows):
        # [3R, C] * [R, C or 1] broadcast through a free sublane-regroup reshape.
        c = v2d.shape[-1]
        return (v2d.reshape(3, rows, c) * fac).reshape(3 * rows, c)

    def gvp(s, v, p, scalar_act, vector_act):
        rows = s.shape[0]
        vh = mm(v, get_w(p + "wh"))                                   # [3R, h] (one dot)
        hx, hy, hz = split3(vh, rows)
        vn = jnp.sqrt(jnp.maximum(hx * hx + hy * hy + hz * hz, EPS_NORM))   # [R, h]
        sv = jnp.concatenate([s.astype(jnp.bfloat16),
                              vn.astype(jnp.bfloat16)], axis=-1)      # [R, si+h]
        s_out = mm(sv, get_w(p + "ws")) + get_b(p + "b")              # fused scalar dot
        v_out = mm(vh, get_w(p + "wv"))                               # [3R, vo] (one dot)
        if vector_act:   # sigmoid of per-channel vector norm (no vector_gate)
            ox, oy, oz = split3(v_out, rows)
            gate = jax.nn.sigmoid(
                jnp.sqrt(jnp.maximum(ox * ox + oy * oy + oz * oz, EPS_NORM)))
            v_out = bcast3(v_out, gate, rows)
        if scalar_act:   # relu
            s_out = jnp.maximum(s_out, 0.0)
        return s_out, v_out

    def layer_norm(s, v, wname, bname, rows):
        mean = jnp.mean(s, axis=-1, keepdims=True)
        cen = s - mean
        var = jnp.mean(cen * cen, axis=-1, keepdims=True)
        s_out = cen * lax.rsqrt(var + EPS_LN) * get_b(wname) + get_b(bname)
        vx, vy, vz = split3(v, rows)
        sq = jnp.maximum(vx * vx + vy * vy + vz * vz, EPS_NORM)       # [R, nv]
        inv = lax.rsqrt(jnp.mean(sq, axis=-1, keepdims=True))         # [R, 1]
        return s_out, bcast3(v, inv, rows)

    # ---- message function: 3 GVPs over all edges at once ---------------------
    s = edge_ref[0:e, 0:S_IN]                 # [E, S_IN]  bf16
    v = edge_ref[e:4 * e, 0:V_IN]             # [3E, V_IN] bf16, component-stacked
    s, v = gvp(s, v, "m0_", True, True)
    s, v = gvp(s, v, "m1_", True, True)
    s, v = gvp(s, v, "m2_", False, False)

    # ---- mean aggregation: one f32 dot over a lane-concatenated message slab --
    vx, vy, vz = split3(v, e)
    msg = jnp.concatenate([s, vx, vy, vz], axis=-1)                   # [E, NS+3NV] f32
    dh = jnp.dot(a_ref[...], msg, preferred_element_type=jnp.float32) # [N, NS+3NV]
    dh = dh * deg_ref[...]                                            # 1/deg in f32
    dh_s = dh[:, 0:NS]
    dh_v = jnp.concatenate([dh[:, NS:NS + NV],
                            dh[:, NS + NV:NS + 2 * NV],
                            dh[:, NS + 2 * NV:NS + 3 * NV]], axis=0)  # [3N, NV]

    # ---- residual + LayerNorm 0 ----------------------------------------------
    xs = node_ref[0:n, 0:NS]                  # f32
    xv = node_ref[n:4 * n, 0:NV]              # f32
    s1, v1 = layer_norm(xs + dh_s, xv + dh_v, "ln0_w", "ln0_b", n)

    # ---- pointwise feedforward: 2 GVPs ---------------------------------------
    fs, fv = gvp(s1, v1, "f0_", True, True)
    fs, fv = gvp(fs, fv, "f1_", False, False)

    # ---- residual + LayerNorm 1 -----------------------------------------------
    s2, v2 = layer_norm(s1 + fs, v1 + fv, "ln1_w", "ln1_b", n)

    # ---- single lane-dense output slab [N, 128] (unmasked full-lane stores) ---
    ox, oy, oz = split3(v2, n)
    pad = jnp.zeros((n, OUT_COLS - OUT_USED), jnp.float32)
    out_ref[...] = jnp.concatenate([s2, ox, oy, oz, pad], axis=-1)


# ------------------------------- wrapper ----------------------------------------
@jax.jit
def gvp_conv_layer(w_bf16, b_f32, s, v, edge_index, edge_s, edge_v):
    """w_bf16/b_f32: buffers from pack_params (packed ONCE, outside this call).
    s: [N, NS] f32; v: [N, NV, 3] f32; edge_index: [2, E] int32;
    edge_s: [E, ES]; edge_v: [E, EV, 3]."""
    n, e = s.shape[0], edge_index.shape[1]
    src, dst = edge_index[0], edge_index[1]

    # --- glue: per-edge gathers in component-stacked layout (bf16 matmul feed) --
    v3c = jnp.transpose(v, (2, 0, 1))                  # [3, N, NV]
    ev3c = jnp.transpose(edge_v, (2, 0, 1))            # [3, E, EV]
    # tuple_cat((s_j, v_j), edge_attr, (s_i, v_i))
    s_cat = jnp.concatenate([s[src], edge_s, s[dst]], axis=-1)               # [E, S_IN]
    v_cat = jnp.concatenate([v3c[:, src, :], ev3c, v3c[:, dst, :]],
                            axis=-1).reshape(3 * e, V_IN)                    # [3E, V_IN]
    ecols = max(S_IN, V_IN)
    edge_in = jnp.concatenate(
        [jnp.pad(s_cat, ((0, 0), (0, ecols - S_IN))),
         jnp.pad(v_cat, ((0, 0), (0, ecols - V_IN)))],
        axis=0).astype(jnp.bfloat16)                                         # [4E, ecols]

    ncols = max(NS, NV)
    node_in = jnp.concatenate(
        [jnp.pad(s, ((0, 0), (0, ncols - NS))),
         jnp.pad(v3c.reshape(3 * n, NV), ((0, 0), (0, ncols - NV)))], axis=0)  # [4N] f32

    # --- glue: unnormalized one-hot aggregation matrix + f32 1/deg --------------
    onehot = (dst[None, :] == jnp.arange(n)[:, None]).astype(jnp.float32)    # [N, E]
    deg_inv = 1.0 / jnp.maximum(jnp.sum(onehot, axis=1, keepdims=True), 1.0)  # [N, 1] f32

    out = pl.pallas_call(
        functools.partial(_fused_kernel, n=n, e=e),
        out_shape=jax.ShapeDtypeStruct((n, OUT_COLS), jnp.float32),
        in_specs=[pl.BlockSpec(memory_space=pltpu.MemorySpace.VMEM)] * 6,
        out_specs=pl.BlockSpec(memory_space=pltpu.MemorySpace.VMEM),
    )(edge_in, node_in, onehot, deg_inv, w_bf16, b_f32)

    out_s = out[:, :NS]
    out_v = jnp.transpose(out[:, NS:OUT_USED].reshape(n, 3, NV), (0, 2, 1))  # [N, NV, 3]
    return out_s, out_v


# ------------------------- parameter initialization -----------------------------
def init_params(key):
    ks = iter(jax.random.split(key, 32))

    def lin(o, i, scale=None):
        scale = scale if scale is not None else 1.0 / np.sqrt(i)
        return (scale * jax.random.normal(next(ks), (o, i))).astype(jnp.float32)

    def gvp_p(si, vi, so, vo, h):
        return (lin(h, vi),                                                    # wh (no bias)
                lin(so, si + h),                                               # ws weight
                (0.1 * jax.random.normal(next(ks), (1, so))).astype(jnp.float32),  # ws bias
                lin(vo, h))                                                    # wv (no bias)

    return {
        'm0': gvp_p(S_IN, V_IN, NS, NV, H_M0),
        'm1': gvp_p(NS, NV, NS, NV, H_M),
        'm2': gvp_p(NS, NV, NS, NV, H_M),
        'f0': gvp_p(NS, NV, HID_S, HID_V, H_F0),
        'f1': gvp_p(HID_S, HID_V, NS, NV, H_F1),
        'ln0': (jnp.ones((1, NS), jnp.float32), jnp.zeros((1, NS), jnp.float32)),
        'ln1': (jnp.ones((1, NS), jnp.float32), jnp.zeros((1, NS), jnp.float32)),
    }


# --------------------------- pure-JAX reference ----------------------------------
def _ref_gvp(s, v, p, scalar_act, vector_act):
    wh, ws_w, ws_b, wv = p
    vt = jnp.swapaxes(v, -1, -2)                              # [..., 3, vi]
    vh = vt @ wh.T                                            # [..., 3, h]
    vn = jnp.sqrt(jnp.maximum(jnp.sum(vh * vh, axis=-2), EPS_NORM))
    s_out = jnp.concatenate([s, vn], axis=-1) @ ws_w.T + ws_b
    vo = jnp.swapaxes(vh @ wv.T, -1, -2)                      # [..., vo, 3]
    if vector_act:
        nrm = jnp.sqrt(jnp.maximum(jnp.sum(vo * vo, -1, keepdims=True), EPS_NORM))
        vo = vo * jax.nn.sigmoid(nrm)
    if scalar_act:
        s_out = jnp.maximum(s_out, 0.0)
    return s_out, vo


def _ref_layer_norm(s, v, w, b):
    mean = s.mean(-1, keepdims=True)
    var = ((s - mean) ** 2).mean(-1, keepdims=True)
    s_out = (s - mean) / jnp.sqrt(var + EPS_LN) * w + b
    vn2 = jnp.maximum(jnp.sum(v * v, -1, keepdims=True), EPS_NORM)
    vn = jnp.sqrt(jnp.mean(vn2, axis=-2, keepdims=True))
    return s_out, v / vn


def _ref_forward(params, s, v, edge_index, edge_s, edge_v):
    src, dst = edge_index[0], edge_index[1]
    ms = jnp.concatenate([s[src], edge_s, s[dst]], axis=-1)
    mv = jnp.concatenate([v[src], edge_v, v[dst]], axis=-2)
    ms, mv = _ref_gvp(ms, mv, params['m0'], True, True)
    ms, mv = _ref_gvp(ms, mv, params['m1'], True, True)
    ms, mv = _ref_gvp(ms, mv, params['m2'], False, False)
    n = s.shape[0]
    deg = jax.ops.segment_sum(jnp.ones(dst.shape, jnp.float32), dst, num_segments=n)
    denom = jnp.maximum(deg, 1.0)
    dh_s = jax.ops.segment_sum(ms, dst, num_segments=n) / denom[:, None]
    dh_v = jax.ops.segment_sum(mv, dst, num_segments=n) / denom[:, None, None]
    s1, v1 = _ref_layer_norm(s + dh_s, v + dh_v, *params['ln0'])
    fs, fv = _ref_gvp(s1, v1, params['f0'], True, True)
    fs, fv = _ref_gvp(fs, fv, params['f1'], False, False)
    return _ref_layer_norm(s1 + fs, v1 + fv, *params['ln1'])


# ----------------------------------- main ------------------------------------------
if __name__ == "__main__":
    key = jax.random.PRNGKey(0)
    kp, k1, k2, k3, k4, k5 = jax.random.split(key, 6)
    params = init_params(kp)
    w_bf16, b_f32 = pack_params(params)        # packed once, outside the forward path

    s = jax.random.normal(k1, (N_NODES, NS), jnp.float32)
    v = jax.random.normal(k2, (N_NODES, NV, 3), jnp.float32)
    edge_index = jax.random.randint(k3, (2, N_EDGES), 0, N_NODES)
    edge_s = jax.random.normal(k4, (N_EDGES, ES), jnp.float32)
    edge_v = jax.random.normal(k5, (N_EDGES, EV, 3), jnp.float32)

    out_s, out_v = gvp_conv_layer(w_bf16, b_f32, s, v, edge_index, edge_s, edge_v)
    out_s, out_v = jax.block_until_ready((out_s, out_v))

    # Reference at full f32 precision (local context, no global config side effect).
    with jax.default_matmul_precision("highest"):
        ref_s, ref_v = _ref_forward(params, s, v, edge_index, edge_s, edge_v)
        ref_s, ref_v = jax.block_until_ready((ref_s, ref_v))

    # Kernel uses bf16 MXU matmuls (f32 accumulation); reference is full f32.
    np.testing.assert_allclose(np.asarray(out_s), np.asarray(ref_s), rtol=3e-2, atol=3e-2)
    np.testing.assert_allclose(np.asarray(out_v), np.asarray(ref_v), rtol=3e-2, atol=3e-2)

    print("KERNEL_OK")
</pallas_src>

<mosaic_0001>
module attributes {stable_mosaic.version = 11 : i64} {
  func.func @_fused_kernel(%arg0: memref<128x40xbf16, #tpu.memory_space<vmem>>, %arg1: memref<64x16xf32, #tpu.memory_space<vmem>>, %arg2: memref<16x32xf32, #tpu.memory_space<vmem>>, %arg3: memref<16x1xf32, #tpu.memory_space<vmem>>, %arg4: memref<400x64xbf16, #tpu.memory_space<vmem>>, %arg5: memref<9x64xf32, #tpu.memory_space<vmem>>, %arg6: memref<16x128xf32, #tpu.memory_space<vmem>>) attributes {dimension_semantics = [], scalar_prefetch = 0 : i64, scratch_operands = 0 : i64, tpu.core_type = #tpu.core_type<tc>} {
    %c0 = arith.constant 0 : index
    %c0_0 = arith.constant 0 : index
    %0 = vector.load %arg0[%c0, %c0_0] : memref<128x40xbf16, #tpu.memory_space<vmem>>, vector<32x40xbf16>
    %c32 = arith.constant 32 : index
    %c0_1 = arith.constant 0 : index
    %1 = vector.load %arg0[%c32, %c0_1] : memref<128x40xbf16, #tpu.memory_space<vmem>>, vector<96x10xbf16>
    %c0_2 = arith.constant 0 : index
    %c0_3 = arith.constant 0 : index
    %2 = vector.load %arg4[%c0_2, %c0_3] : memref<400x64xbf16, #tpu.memory_space<vmem>>, vector<10x10xbf16>
    %cst = arith.constant dense<0.000000e+00> : vector<96x10xf32>
    %3 = tpu.matmul %1, %2, %cst {dimension_numbers = #tpu.dot_dimension_numbers<[1], [0], [0], [1], [0, 0, 1, 1], [], []>} : vector<96x10xbf16>, vector<10x10xbf16>, vector<96x10xf32> -> vector<96x10xf32>
    %4 = vector.extract_strided_slice %3 {offsets = [0, 0], sizes = [32, 10], strides = [1, 1]} : vector<96x10xf32> to vector<32x10xf32>
    %5 = vector.extract_strided_slice %3 {offsets = [32, 0], sizes = [32, 10], strides = [1, 1]} : vector<96x10xf32> to vector<32x10xf32>
    %6 = vector.extract_strided_slice %3 {offsets = [64, 0], sizes = [32, 10], strides = [1, 1]} : vector<96x10xf32> to vector<32x10xf32>
    %7 = arith.mulf %4, %4 : vector<32x10xf32>
    %8 = arith.mulf %5, %5 : vector<32x10xf32>
    %9 = arith.addf %7, %8 : vector<32x10xf32>
    %10 = arith.mulf %6, %6 : vector<32x10xf32>
    %11 = arith.addf %9, %10 : vector<32x10xf32>
    %cst_4 = arith.constant 9.99999993E-9 : f32
    %12 = vector.broadcast %cst_4 : f32 to vector<32x10xf32>
    %13 = arith.maximumf %11, %12 : vector<32x10xf32>
    %14 = math.sqrt %13 : vector<32x10xf32>
    %15 = arith.truncf %14 : vector<32x10xf32> to vector<32x10xbf16>
    %16 = tpu.concatenate %0, %15 in 1 : vector<32x40xbf16>, vector<32x10xbf16> -> vector<32x50xbf16>
    %c16 = arith.constant 16 : index
    %c0_5 = arith.constant 0 : index
    %17 = vector.load %arg4[%c16, %c0_5] : memref<400x64xbf16, #tpu.memory_space<vmem>>, vector<50x16xbf16>
    %cst_6 = arith.constant dense<0.000000e+00> : vector<32x16xf32>
    %18 = tpu.matmul %16, %17, %cst_6 {dimension_numbers = #tpu.dot_dimension_numbers<[1], [0], [0], [1], [0, 0, 1, 1], [], []>} : vector<32x50xbf16>, vector<50x16xbf16>, vector<32x16xf32> -> vector<32x16xf32>
    %c0_7 = arith.constant 0 : index
    %c0_8 = arith.constant 0 : index
    %19 = vector.load %arg5[%c0_7, %c0_8] : memref<9x64xf32, #tpu.memory_space<vmem>>, vector<1x16xf32>
    %20 = vector.broadcast %19 : vector<1x16xf32> to vector<32x16xf32>
    %21 = arith.addf %18, %20 : vector<32x16xf32>
    %c80 = arith.constant 80 : index
    %c0_9 = arith.constant 0 : index
    %22 = vector.load %arg4[%c80, %c0_9] : memref<400x64xbf16, #tpu.memory_space<vmem>>, vector<10x4xbf16>
    %23 = arith.truncf %3 : vector<96x10xf32> to vector<96x10xbf16>
    %cst_10 = arith.constant dense<0.000000e+00> : vector<96x4xf32>
    %24 = tpu.matmul %23, %22, %cst_10 {dimension_numbers = #tpu.dot_dimension_numbers<[1], [0], [0], [1], [0, 0, 1, 1], [], []>} : vector<96x10xbf16>, vector<10x4xbf16>, vector<96x4xf32> -> vector<96x4xf32>
    %25 = vector.extract_strided_slice %24 {offsets = [0, 0], sizes = [32, 4], strides = [1, 1]} : vector<96x4xf32> to vector<32x4xf32>
    %26 = vector.extract_strided_slice %24 {offsets = [32, 0], sizes = [32, 4], strides = [1, 1]} : vector<96x4xf32> to vector<32x4xf32>
    %27 = vector.extract_strided_slice %24 {offsets = [64, 0], sizes = [32, 4], strides = [1, 1]} : vector<96x4xf32> to vector<32x4xf32>
    %28 = arith.mulf %25, %25 : vector<32x4xf32>
    %29 = arith.mulf %26, %26 : vector<32x4xf32>
    %30 = arith.addf %28, %29 : vector<32x4xf32>
    %31 = arith.mulf %27, %27 : vector<32x4xf32>
    %32 = arith.addf %30, %31 : vector<32x4xf32>
    %cst_11 = arith.constant 9.99999993E-9 : f32
    %33 = vector.broadcast %cst_11 : f32 to vector<32x4xf32>
    %34 = arith.maximumf %32, %33 : vector<32x4xf32>
    %35 = math.sqrt %34 : vector<32x4xf32>
    %36 = arith.negf %35 : vector<32x4xf32>
    %37 = math.exp %36 : vector<32x4xf32>
    %cst_12 = arith.constant 1.000000e+00 : f32
    %38 = vector.broadcast %cst_12 : f32 to vector<32x4xf32>
    %39 = arith.addf %38, %37 : vector<32x4xf32>
    %40 = arith.divf %38, %39 : vector<32x4xf32>
    %41 = vector.shape_cast %24 : vector<96x4xf32> to vector<3x32x4xf32>
    %42 = vector.shape_cast %40 : vector<32x4xf32> to vector<1x32x4xf32>
    %43 = vector.broadcast %42 : vector<1x32x4xf32> to vector<3x32x4xf32>
    %44 = arith.mulf %41, %43 : vector<3x32x4xf32>
    %45 = vector.shape_cast %44 : vector<3x32x4xf32> to vector<96x4xf32>
    %cst_13 = arith.constant 0.000000e+00 : f32
    %46 = vector.broadcast %cst_13 : f32 to vector<32x16xf32>
    %47 = arith.maximumf %21, %46 : vector<32x16xf32>
    %c96 = arith.constant 96 : index
    %c0_14 = arith.constant 0 : index
    %48 = vector.load %arg4[%c96, %c0_14] : memref<400x64xbf16, #tpu.memory_space<vmem>>, vector<4x4xbf16>
    %49 = arith.truncf %45 : vector<96x4xf32> to vector<96x4xbf16>
    %cst_15 = arith.constant dense<0.000000e+00> : vector<96x4xf32>
    %50 = tpu.matmul %49, %48, %cst_15 {dimension_numbers = #tpu.dot_dimension_numbers<[1], [0], [0], [1], [0, 0, 1, 1], [], []>} : vector<96x4xbf16>, vector<4x4xbf16>, vector<96x4xf32> -> vector<96x4xf32>
    %51 = vector.extract_strided_slice %50 {offsets = [0, 0], sizes = [32, 4], strides = [1, 1]} : vector<96x4xf32> to vector<32x4xf32>
    %52 = vector.extract_strided_slice %50 {offsets = [32, 0], sizes = [32, 4], strides = [1, 1]} : vector<96x4xf32> to vector<32x4xf32>
    %53 = vector.extract_strided_slice %50 {offsets = [64, 0], sizes = [32, 4], strides = [1, 1]} : vector<96x4xf32> to vector<32x4xf32>
    %54 = arith.mulf %51, %51 : vector<32x4xf32>
    %55 = arith.mulf %52, %52 : vector<32x4xf32>
    %56 = arith.addf %54, %55 : vector<32x4xf32>
    %57 = arith.mulf %53, %53 : vector<32x4xf32>
    %58 = arith.addf %56, %57 : vector<32x4xf32>
    %cst_16 = arith.constant 9.99999993E-9 : f32
    %59 = vector.broadcast %cst_16 : f32 to vector<32x4xf32>
    %60 = arith.maximumf %58, %59 : vector<32x4xf32>
    %61 = math.sqrt %60 : vector<32x4xf32>
    %62 = arith.truncf %47 : vector<32x16xf32> to vector<32x16xbf16>
    %63 = arith.truncf %61 : vector<32x4xf32> to vector<32x4xbf16>
    %64 = tpu.concatenate %62, %63 in 1 : vector<32x16xbf16>, vector<32x4xbf16> -> vector<32x20xbf16>
    %c112 = arith.constant 112 : index
    %c0_17 = arith.constant 0 : index
    %65 = vector.load %arg4[%c112, %c0_17] : memref<400x64xbf16, #tpu.memory_space<vmem>>, vector<20x16xbf16>
    %cst_18 = arith.constant dense<0.000000e+00> : vector<32x16xf32>
    %66 = tpu.matmul %64, %65, %cst_18 {dimension_numbers = #tpu.dot_dimension_numbers<[1], [0], [0], [1], [0, 0, 1, 1], [], []>} : vector<32x20xbf16>, vector<20x16xbf16>, vector<32x16xf32> -> vector<32x16xf32>
    %c1 = arith.constant 1 : index
    %c0_19 = arith.constant 0 : index
    %67 = vector.load %arg5[%c1, %c0_19] : memref<9x64xf32, #tpu.memory_space<vmem>>, vector<1x16xf32>
    %68 = vector.broadcast %67 : vector<1x16xf32> to vector<32x16xf32>
    %69 = arith.addf %66, %68 : vector<32x16xf32>
    %c144 = arith.constant 144 : index
    %c0_20 = arith.constant 0 : index
    %70 = vector.load %arg4[%c144, %c0_20] : memref<400x64xbf16, #tpu.memory_space<vmem>>, vector<4x4xbf16>
    %71 = arith.truncf %50 : vector<96x4xf32> to vector<96x4xbf16>
    %cst_21 = arith.constant dense<0.000000e+00> : vector<96x4xf32>
    %72 = tpu.matmul %71, %70, %cst_21 {dimension_numbers = #tpu.dot_dimension_numbers<[1], [0], [0], [1], [0, 0, 1, 1], [], []>} : vector<96x4xbf16>, vector<4x4xbf16>, vector<96x4xf32> -> vector<96x4xf32>
    %73 = vector.extract_strided_slice %72 {offsets = [0, 0], sizes = [32, 4], strides = [1, 1]} : vector<96x4xf32> to vector<32x4xf32>
    %74 = vector.extract_strided_slice %72 {offsets = [32, 0], sizes = [32, 4], strides = [1, 1]} : vector<96x4xf32> to vector<32x4xf32>
    %75 = vector.extract_strided_slice %72 {offsets = [64, 0], sizes = [32, 4], strides = [1, 1]} : vector<96x4xf32> to vector<32x4xf32>
    %76 = arith.mulf %73, %73 : vector<32x4xf32>
    %77 = arith.mulf %74, %74 : vector<32x4xf32>
    %78 = arith.addf %76, %77 : vector<32x4xf32>
    %79 = arith.mulf %75, %75 : vector<32x4xf32>
    %80 = arith.addf %78, %79 : vector<32x4xf32>
    %cst_22 = arith.constant 9.99999993E-9 : f32
    %81 = vector.broadcast %cst_22 : f32 to vector<32x4xf32>
    %82 = arith.maximumf %80, %81 : vector<32x4xf32>
    %83 = math.sqrt %82 : vector<32x4xf32>
    %84 = arith.negf %83 : vector<32x4xf32>
    %85 = math.exp %84 : vector<32x4xf32>
    %cst_23 = arith.constant 1.000000e+00 : f32
    %86 = vector.broadcast %cst_23 : f32 to vector<32x4xf32>
    %87 = arith.addf %86, %85 : vector<32x4xf32>
    %88 = arith.divf %86, %87 : vector<32x4xf32>
    %89 = vector.shape_cast %72 : vector<96x4xf32> to vector<3x32x4xf32>
    %90 = vector.shape_cast %88 : vector<32x4xf32> to vector<1x32x4xf32>
    %91 = vector.broadcast %90 : vector<1x32x4xf32> to vector<3x32x4xf32>
    %92 = arith.mulf %89, %91 : vector<3x32x4xf32>
    %93 = vector.shape_cast %92 : vector<3x32x4xf32> to vector<96x4xf32>
    %cst_24 = arith.constant 0.000000e+00 : f32
    %94 = vector.broadcast %cst_24 : f32 to vector<32x16xf32>
    %95 = arith.maximumf %69, %94 : vector<32x16xf32>
    %c160 = arith.constant 160 : index
    %c0_25 = arith.constant 0 : index
    %96 = vector.load %arg4[%c160, %c0_25] : memref<400x64xbf16, #tpu.memory_space<vmem>>, vector<4x4xbf16>
    %97 = arith.truncf %93 : vector<96x4xf32> to vector<96x4xbf16>
    %cst_26 = arith.constant dense<0.000000e+00> : vector<96x4xf32>
    %98 = tpu.matmul %97, %96, %cst_26 {dimension_numbers = #tpu.dot_dimension_numbers<[1], [0], [0], [1], [0, 0, 1, 1], [], []>} : vector<96x4xbf16>, vector<4x4xbf16>, vector<96x4xf32> -> vector<96x4xf32>
    %99 = vector.extract_strided_slice %98 {offsets = [0, 0], sizes = [32, 4], strides = [1, 1]} : vector<96x4xf32> to vector<32x4xf32>
    %100 = vector.extract_strided_slice %98 {offsets = [32, 0], sizes = [32, 4], strides = [1, 1]} : vector<96x4xf32> to vector<32x4xf32>
    %101 = vector.extract_strided_slice %98 {offsets = [64, 0], sizes = [32, 4], strides = [1, 1]} : vector<96x4xf32> to vector<32x4xf32>
    %102 = arith.mulf %99, %99 : vector<32x4xf32>
    %103 = arith.mulf %100, %100 : vector<32x4xf32>
    %104 = arith.addf %102, %103 : vector<32x4xf32>
    %105 = arith.mulf %101, %101 : vector<32x4xf32>
    %106 = arith.addf %104, %105 : vector<32x4xf32>
    %cst_27 = arith.constant 9.99999993E-9 : f32
    %107 = vector.broadcast %cst_27 : f32 to vector<32x4xf32>
    %108 = arith.maximumf %106, %107 : vector<32x4xf32>
    %109 = math.sqrt %108 : vector<32x4xf32>
    %110 = arith.truncf %95 : vector<32x16xf32> to vector<32x16xbf16>
    %111 = arith.truncf %109 : vector<32x4xf32> to vector<32x4xbf16>
    %112 = tpu.concatenate %110, %111 in 1 : vector<32x16xbf16>, vector<32x4xbf16> -> vector<32x20xbf16>
    %c176 = arith.constant 176 : index
    %c0_28 = arith.constant 0 : index
    %113 = vector.load %arg4[%c176, %c0_28] : memref<400x64xbf16, #tpu.memory_space<vmem>>, vector<20x16xbf16>
    %cst_29 = arith.constant dense<0.000000e+00> : vector<32x16xf32>
    %114 = tpu.matmul %112, %113, %cst_29 {dimension_numbers = #tpu.dot_dimension_numbers<[1], [0], [0], [1], [0, 0, 1, 1], [], []>} : vector<32x20xbf16>, vector<20x16xbf16>, vector<32x16xf32> -> vector<32x16xf32>
    %c2 = arith.constant 2 : index
    %c0_30 = arith.constant 0 : index
    %115 = vector.load %arg5[%c2, %c0_30] : memref<9x64xf32, #tpu.memory_space<vmem>>, vector<1x16xf32>
    %116 = vector.broadcast %115 : vector<1x16xf32> to vector<32x16xf32>
    %117 = arith.addf %114, %116 : vector<32x16xf32>
    %c208 = arith.constant 208 : index
    %c0_31 = arith.constant 0 : index
    %118 = vector.load %arg4[%c208, %c0_31] : memref<400x64xbf16, #tpu.memory_space<vmem>>, vector<4x4xbf16>
    %119 = arith.truncf %98 : vector<96x4xf32> to vector<96x4xbf16>
    %cst_32 = arith.constant dense<0.000000e+00> : vector<96x4xf32>
    %120 = tpu.matmul %119, %118, %cst_32 {dimension_numbers = #tpu.dot_dimension_numbers<[1], [0], [0], [1], [0, 0, 1, 1], [], []>} : vector<96x4xbf16>, vector<4x4xbf16>, vector<96x4xf32> -> vector<96x4xf32>
    %121 = vector.extract_strided_slice %120 {offsets = [0, 0], sizes = [32, 4], strides = [1, 1]} : vector<96x4xf32> to vector<32x4xf32>
    %122 = vector.extract_strided_slice %120 {offsets = [32, 0], sizes = [32, 4], strides = [1, 1]} : vector<96x4xf32> to vector<32x4xf32>
    %123 = vector.extract_strided_slice %120 {offsets = [64, 0], sizes = [32, 4], strides = [1, 1]} : vector<96x4xf32> to vector<32x4xf32>
    %124 = tpu.concatenate %117, %121, %122, %123 in 1 : vector<32x16xf32>, vector<32x4xf32>, vector<32x4xf32>, vector<32x4xf32> -> vector<32x28xf32>
    %c0_33 = arith.constant 0 : index
    %c0_34 = arith.constant 0 : index
    %125 = vector.load %arg2[%c0_33, %c0_34] : memref<16x32xf32, #tpu.memory_space<vmem>>, vector<16x32xf32>
    %cst_35 = arith.constant dense<0.000000e+00> : vector<16x28xf32>
    %126 = tpu.matmul %125, %124, %cst_35 {dimension_numbers = #tpu.dot_dimension_numbers<[1], [0], [0], [1], [0, 0, 1, 1], [], []>} : vector<16x32xf32>, vector<32x28xf32>, vector<16x28xf32> -> vector<16x28xf32>
    %c0_36 = arith.constant 0 : index
    %c0_37 = arith.constant 0 : index
    %127 = vector.load %arg3[%c0_36, %c0_37] : memref<16x1xf32, #tpu.memory_space<vmem>>, vector<16x1xf32>
    %128 = vector.broadcast %127 : vector<16x1xf32> to vector<16x28xf32>
    %129 = arith.mulf %126, %128 : vector<16x28xf32>
    %130 = vector.extract_strided_slice %129 {offsets = [0, 0], sizes = [16, 16], strides = [1, 1]} : vector<16x28xf32> to vector<16x16xf32>
    %131 = vector.extract_strided_slice %129 {offsets = [0, 16], sizes = [16, 4], strides = [1, 1]} : vector<16x28xf32> to vector<16x4xf32>
    %132 = vector.extract_strided_slice %129 {offsets = [0, 20], sizes = [16, 4], strides = [1, 1]} : vector<16x28xf32> to vector<16x4xf32>
    %133 = vector.extract_strided_slice %129 {offsets = [0, 24], sizes = [16, 4], strides = [1, 1]} : vector<16x28xf32> to vector<16x4xf32>
    %134 = tpu.concatenate %131, %132, %133 in 0 : vector<16x4xf32>, vector<16x4xf32>, vector<16x4xf32> -> vector<48x4xf32>
    %c0_38 = arith.constant 0 : index
    %c0_39 = arith.constant 0 : index
    %135 = vector.load %arg1[%c0_38, %c0_39] : memref<64x16xf32, #tpu.memory_space<vmem>>, vector<16x16xf32>
    %c16_40 = arith.constant 16 : index
    %c0_41 = arith.constant 0 : index
    %136 = vector.load %arg1[%c16_40, %c0_41] : memref<64x16xf32, #tpu.memory_space<vmem>>, vector<48x4xf32>
    %137 = arith.addf %135, %130 : vector<16x16xf32>
    %138 = arith.addf %136, %134 : vector<48x4xf32>
    %cst_42 = arith.constant dense<0.000000e+00> : vector<16xf32>
    %139 = vector.multi_reduction <add>, %137, %cst_42 [1] : vector<16x16xf32> to vector<16xf32>
    %140 = vector.shape_cast %139 : vector<16xf32> to vector<16x1xf32>
    %cst_43 = arith.constant 1.600000e+01 : f32
    %141 = vector.broadcast %cst_43 : f32 to vector<16x1xf32>
    %142 = arith.divf %140, %141 : vector<16x1xf32>
    %143 = vector.broadcast %142 : vector<16x1xf32> to vector<16x16xf32>
    %144 = arith.subf %137, %143 : vector<16x16xf32>
    %145 = arith.mulf %144, %144 : vector<16x16xf32>
    %cst_44 = arith.constant dense<0.000000e+00> : vector<16xf32>
    %146 = vector.multi_reduction <add>, %145, %cst_44 [1] : vector<16x16xf32> to vector<16xf32>
    %147 = vector.shape_cast %146 : vector<16xf32> to vector<16x1xf32>
    %cst_45 = arith.constant 1.600000e+01 : f32
    %148 = vector.broadcast %cst_45 : f32 to vector<16x1xf32>
    %149 = arith.divf %147, %148 : vector<16x1xf32>
    %cst_46 = arith.constant 9.99999974E-6 : f32
    %150 = vector.broadcast %cst_46 : f32 to vector<16x1xf32>
    %151 = arith.addf %149, %150 : vector<16x1xf32>
    %152 = math.rsqrt %151 : vector<16x1xf32>
    %153 = vector.broadcast %152 : vector<16x1xf32> to vector<16x16xf32>
    %154 = arith.mulf %144, %153 : vector<16x16xf32>
    %c5 = arith.constant 5 : index
    %c0_47 = arith.constant 0 : index
    %155 = vector.load %arg5[%c5, %c0_47] : memref<9x64xf32, #tpu.memory_space<vmem>>, vector<1x16xf32>
    %156 = vector.broadcast %155 : vector<1x16xf32> to vector<16x16xf32>
    %157 = arith.mulf %154, %156 : vector<16x16xf32>
    %c6 = arith.constant 6 : index
    %c0_48 = arith.constant 0 : index
    %158 = vector.load %arg5[%c6, %c0_48] : memref<9x64xf32, #tpu.memory_space<vmem>>, vector<1x16xf32>
    %159 = vector.broadcast %158 : vector<1x16xf32> to vector<16x16xf32>
    %160 = arith.addf %157, %159 : vector<16x16xf32>
    %161 = vector.extract_strided_slice %138 {offsets = [0, 0], sizes = [16, 4], strides = [1, 1]} : vector<48x4xf32> to vector<16x4xf32>
    %162 = vector.extract_strided_slice %138 {offsets = [16, 0], sizes = [16, 4], strides = [1, 1]} : vector<48x4xf32> to vector<16x4xf32>
    %163 = vector.extract_strided_slice %138 {offsets = [32, 0], sizes = [16, 4], strides = [1, 1]} : vector<48x4xf32> to vector<16x4xf32>
    %164 = arith.mulf %161, %161 : vector<16x4xf32>
    %165 = arith.mulf %162, %162 : vector<16x4xf32>
    %166 = arith.addf %164, %165 : vector<16x4xf32>
    %167 = arith.mulf %163, %163 : vector<16x4xf32>
    %168 = arith.addf %166, %167 : vector<16x4xf32>
    %cst_49 = arith.constant 9.99999993E-9 : f32
    %169 = vector.broadcast %cst_49 : f32 to vector<16x4xf32>
    %170 = arith.maximumf %168, %169 : vector<16x4xf32>
    %cst_50 = arith.constant dense<0.000000e+00> : vector<16xf32>
    %171 = vector.multi_reduction <add>, %170, %cst_50 [1] : vector<16x4xf32> to vector<16xf32>
    %172 = vector.shape_cast %171 : vector<16xf32> to vector<16x1xf32>
    %cst_51 = arith.constant 4.000000e+00 : f32
    %173 = vector.broadcast %cst_51 : f32 to vector<16x1xf32>
    %174 = arith.divf %172, %173 : vector<16x1xf32>
    %175 = math.rsqrt %174 : vector<16x1xf32>
    %176 = vector.shape_cast %138 : vector<48x4xf32> to vector<3x16x4xf32>
    %177 = vector.shape_cast %175 : vector<16x1xf32> to vector<1x16x1xf32>
    %178 = vector.broadcast %177 : vector<1x16x1xf32> to vector<3x16x4xf32>
    %179 = arith.mulf %176, %178 : vector<3x16x4xf32>
    %180 = vector.shape_cast %179 : vector<3x16x4xf32> to vector<48x4xf32>
    %c224 = arith.constant 224 : index
    %c0_52 = arith.constant 0 : index
    %181 = vector.load %arg4[%c224, %c0_52] : memref<400x64xbf16, #tpu.memory_space<vmem>>, vector<4x8xbf16>
    %182 = arith.truncf %180 : vector<48x4xf32> to vector<48x4xbf16>
    %cst_53 = arith.constant dense<0.000000e+00> : vector<48x8xf32>
    %183 = tpu.matmul %182, %181, %cst_53 {dimension_numbers = #tpu.dot_dimension_numbers<[1], [0], [0], [1], [0, 0, 1, 1], [], []>} : vector<48x4xbf16>, vector<4x8xbf16>, vector<48x8xf32> -> vector<48x8xf32>
    %184 = vector.extract_strided_slice %183 {offsets = [0, 0], sizes = [16, 8], strides = [1, 1]} : vector<48x8xf32> to vector<16x8xf32>
    %185 = vector.extract_strided_slice %183 {offsets = [16, 0], sizes = [16, 8], strides = [1, 1]} : vector<48x8xf32> to vector<16x8xf32>
    %186 = vector.extract_strided_slice %183 {offsets = [32, 0], sizes = [16, 8], strides = [1, 1]} : vector<48x8xf32> to vector<16x8xf32>
    %187 = arith.mulf %184, %184 : vector<16x8xf32>
    %188 = arith.mulf %185, %185 : vector<16x8xf32>
    %189 = arith.addf %187, %188 : vector<16x8xf32>
    %190 = arith.mulf %186, %186 : vector<16x8xf32>
    %191 = arith.addf %189, %190 : vector<16x8xf32>
    %cst_54 = arith.constant 9.99999993E-9 : f32
    %192 = vector.broadcast %cst_54 : f32 to vector<16x8xf32>
    %193 = arith.maximumf %191, %192 : vector<16x8xf32>
    %194 = math.sqrt %193 : vector<16x8xf32>
    %195 = arith.truncf %160 : vector<16x16xf32> to vector<16x16xbf16>
    %196 = arith.truncf %194 : vector<16x8xf32> to vector<16x8xbf16>
    %197 = tpu.concatenate %195, %196 in 1 : vector<16x16xbf16>, vector<16x8xbf16> -> vector<16x24xbf16>
    %c240 = arith.constant 240 : index
    %c0_55 = arith.constant 0 : index
    %198 = vector.load %arg4[%c240, %c0_55] : memref<400x64xbf16, #tpu.memory_space<vmem>>, vector<24x64xbf16>
    %cst_56 = arith.constant dense<0.000000e+00> : vector<16x64xf32>
    %199 = tpu.matmul %197, %198, %cst_56 {dimension_numbers = #tpu.dot_dimension_numbers<[1], [0], [0], [1], [0, 0, 1, 1], [], []>} : vector<16x24xbf16>, vector<24x64xbf16>, vector<16x64xf32> -> vector<16x64xf32>
    %c3 = arith.constant 3 : index
    %c0_57 = arith.constant 0 : index
    %200 = vector.load %arg5[%c3, %c0_57] : memref<9x64xf32, #tpu.memory_space<vmem>>, vector<1x64xf32>
    %201 = vector.broadcast %200 : vector<1x64xf32> to vector<16x64xf32>
    %202 = arith.addf %199, %201 : vector<16x64xf32>
    %c272 = arith.constant 272 : index
    %c0_58 = arith.constant 0 : index
    %203 = vector.load %arg4[%c272, %c0_58] : memref<400x64xbf16, #tpu.memory_space<vmem>>, vector<8x8xbf16>
    %204 = arith.truncf %183 : vector<48x8xf32> to vector<48x8xbf16>
    %cst_59 = arith.constant dense<0.000000e+00> : vector<48x8xf32>
    %205 = tpu.matmul %204, %203, %cst_59 {dimension_numbers = #tpu.dot_dimension_numbers<[1], [0], [0], [1], [0, 0, 1, 1], [], []>} : vector<48x8xbf16>, vector<8x8xbf16>, vector<48x8xf32> -> vector<48x8xf32>
    %206 = vector.extract_strided_slice %205 {offsets = [0, 0], sizes = [16, 8], strides = [1, 1]} : vector<48x8xf32> to vector<16x8xf32>
    %207 = vector.extract_strided_slice %205 {offsets = [16, 0], sizes = [16, 8], strides = [1, 1]} : vector<48x8xf32> to vector<16x8xf32>
    %208 = vector.extract_strided_slice %205 {offsets = [32, 0], sizes = [16, 8], strides = [1, 1]} : vector<48x8xf32> to vector<16x8xf32>
    %209 = arith.mulf %206, %206 : vector<16x8xf32>
    %210 = arith.mulf %207, %207 : vector<16x8xf32>
    %211 = arith.addf %209, %210 : vector<16x8xf32>
    %212 = arith.mulf %208, %208 : vector<16x8xf32>
    %213 = arith.addf %211, %212 : vector<16x8xf32>
    %cst_60 = arith.constant 9.99999993E-9 : f32
    %214 = vector.broadcast %cst_60 : f32 to vector<16x8xf32>
    %215 = arith.maximumf %213, %214 : vector<16x8xf32>
    %216 = math.sqrt %215 : vector<16x8xf32>
    %217 = arith.negf %216 : vector<16x8xf32>
    %218 = math.exp %217 : vector<16x8xf32>
    %cst_61 = arith.constant 1.000000e+00 : f32
    %219 = vector.broadcast %cst_61 : f32 to vector<16x8xf32>
    %220 = arith.addf %219, %218 : vector<16x8xf32>
    %221 = arith.divf %219, %220 : vector<16x8xf32>
    %222 = vector.shape_cast %205 : vector<48x8xf32> to vector<3x16x8xf32>
    %223 = vector.shape_cast %221 : vector<16x8xf32> to vector<1x16x8xf32>
    %224 = vector.broadcast %223 : vector<1x16x8xf32> to vector<3x16x8xf32>
    %225 = arith.mulf %222, %224 : vector<3x16x8xf32>
    %226 = vector.shape_cast %225 : vector<3x16x8xf32> to vector<48x8xf32>
    %cst_62 = arith.constant 0.000000e+00 : f32
    %227 = vector.broadcast %cst_62 : f32 to vector<16x64xf32>
    %228 = arith.maximumf %202, %227 : vector<16x64xf32>
    %c288 = arith.constant 288 : index
    %c0_63 = arith.constant 0 : index
    %229 = vector.load %arg4[%c288, %c0_63] : memref<400x64xbf16, #tpu.memory_space<vmem>>, vector<8x8xbf16>
    %230 = arith.truncf %226 : vector<48x8xf32> to vector<48x8xbf16>
    %cst_64 = arith.constant dense<0.000000e+00> : vector<48x8xf32>
    %231 = tpu.matmul %230, %229, %cst_64 {dimension_numbers = #tpu.dot_dimension_numbers<[1], [0], [0], [1], [0, 0, 1, 1], [], []>} : vector<48x8xbf16>, vector<8x8xbf16>, vector<48x8xf32> -> vector<48x8xf32>
    %232 = vector.extract_strided_slice %231 {offsets = [0, 0], sizes = [16, 8], strides = [1, 1]} : vector<48x8xf32> to vector<16x8xf32>
    %233 = vector.extract_strided_slice %231 {offsets = [16, 0], sizes = [16, 8], strides = [1, 1]} : vector<48x8xf32> to vector<16x8xf32>
    %234 = vector.extract_strided_slice %231 {offsets = [32, 0], sizes = [16, 8], strides = [1, 1]} : vector<48x8xf32> to vector<16x8xf32>
    %235 = arith.mulf %232, %232 : vector<16x8xf32>
    %236 = arith.mulf %233, %233 : vector<16x8xf32>
    %237 = arith.addf %235, %236 : vector<16x8xf32>
    %238 = arith.mulf %234, %234 : vector<16x8xf32>
    %239 = arith.addf %237, %238 : vector<16x8xf32>
    %cst_65 = arith.constant 9.99999993E-9 : f32
    %240 = vector.broadcast %cst_65 : f32 to vector<16x8xf32>
    %241 = arith.maximumf %239, %240 : vector<16x8xf32>
    %242 = math.sqrt %241 : vector<16x8xf32>
    %243 = arith.truncf %228 : vector<16x64xf32> to vector<16x64xbf16>
    %244 = arith.truncf %242 : vector<16x8xf32> to vector<16x8xbf16>
    %245 = tpu.concatenate %243, %244 in 1 : vector<16x64xbf16>, vector<16x8xbf16> -> vector<16x72xbf16>
    %c304 = arith.constant 304 : index
    %c0_66 = arith.constant 0 : index
    %246 = vector.load %arg4[%c304, %c0_66] : memref<400x64xbf16, #tpu.memory_space<vmem>>, vector<72x16xbf16>
    %cst_67 = arith.constant dense<0.000000e+00> : vector<16x16xf32>
    %247 = tpu.matmul %245, %246, %cst_67 {dimension_numbers = #tpu.dot_dimension_numbers<[1], [0], [0], [1], [0, 0, 1, 1], [], []>} : vector<16x72xbf16>, vector<72x16xbf16>, vector<16x16xf32> -> vector<16x16xf32>
    %c4 = arith.constant 4 : index
    %c0_68 = arith.constant 0 : index
    %248 = vector.load %arg5[%c4, %c0_68] : memref<9x64xf32, #tpu.memory_space<vmem>>, vector<1x16xf32>
    %249 = vector.broadcast %248 : vector<1x16xf32> to vector<16x16xf32>
    %250 = arith.addf %247, %249 : vector<16x16xf32>
    %c384 = arith.constant 384 : index
    %c0_69 = arith.constant 0 : index
    %251 = vector.load %arg4[%c384, %c0_69] : memref<400x64xbf16, #tpu.memory_space<vmem>>, vector<8x4xbf16>
    %252 = arith.truncf %231 : vector<48x8xf32> to vector<48x8xbf16>
    %cst_70 = arith.constant dense<0.000000e+00> : vector<48x4xf32>
    %253 = tpu.matmul %252, %251, %cst_70 {dimension_numbers = #tpu.dot_dimension_numbers<[1], [0], [0], [1], [0, 0, 1, 1], [], []>} : vector<48x8xbf16>, vector<8x4xbf16>, vector<48x4xf32> -> vector<48x4xf32>
    %254 = arith.addf %160, %250 : vector<16x16xf32>
    %255 = arith.addf %180, %253 : vector<48x4xf32>
    %cst_71 = arith.constant dense<0.000000e+00> : vector<16xf32>
    %256 = vector.multi_reduction <add>, %254, %cst_71 [1] : vector<16x16xf32> to vector<16xf32>
    %257 = vector.shape_cast %256 : vector<16xf32> to vector<16x1xf32>
    %cst_72 = arith.constant 1.600000e+01 : f32
    %258 = vector.broadcast %cst_72 : f32 to vector<16x1xf32>
    %259 = arith.divf %257, %258 : vector<16x1xf32>
    %260 = vector.broadcast %259 : vector<16x1xf32> to vector<16x16xf32>
    %261 = arith.subf %254, %260 : vector<16x16xf32>
    %262 = arith.mulf %261, %261 : vector<16x16xf32>
    %cst_73 = arith.constant dense<0.000000e+00> : vector<16xf32>
    %263 = vector.multi_reduction <add>, %262, %cst_73 [1] : vector<16x16xf32> to vector<16xf32>
    %264 = vector.shape_cast %263 : vector<16xf32> to vector<16x1xf32>
    %cst_74 = arith.constant 1.600000e+01 : f32
    %265 = vector.broadcast %cst_74 : f32 to vector<16x1xf32>
    %266 = arith.divf %264, %265 : vector<16x1xf32>
    %cst_75 = arith.constant 9.99999974E-6 : f32
    %267 = vector.broadcast %cst_75 : f32 to vector<16x1xf32>
    %268 = arith.addf %266, %267 : vector<16x1xf32>
    %269 = math.rsqrt %268 : vector<16x1xf32>
    %270 = vector.broadcast %269 : vector<16x1xf32> to vector<16x16xf32>
    %271 = arith.mulf %261, %270 : vector<16x16xf32>
    %c7 = arith.constant 7 : index
    %c0_76 = arith.constant 0 : index
    %272 = vector.load %arg5[%c7, %c0_76] : memref<9x64xf32, #tpu.memory_space<vmem>>, vector<1x16xf32>
    %273 = vector.broadcast %272 : vector<1x16xf32> to vector<16x16xf32>
    %274 = arith.mulf %271, %273 : vector<16x16xf32>
    %c8 = arith.constant 8 : index
    %c0_77 = arith.constant 0 : index
    %275 = vector.load %arg5[%c8, %c0_77] : memref<9x64xf32, #tpu.memory_space<vmem>>, vector<1x16xf32>
    %276 = vector.broadcast %275 : vector<1x16xf32> to vector<16x16xf32>
    %277 = arith.addf %274, %276 : vector<16x16xf32>
    %278 = vector.extract_strided_slice %255 {offsets = [0, 0], sizes = [16, 4], strides = [1, 1]} : vector<48x4xf32> to vector<16x4xf32>
    %279 = vector.extract_strided_slice %255 {offsets = [16, 0], sizes = [16, 4], strides = [1, 1]} : vector<48x4xf32> to vector<16x4xf32>
    %280 = vector.extract_strided_slice %255 {offsets = [32, 0], sizes = [16, 4], strides = [1, 1]} : vector<48x4xf32> to vector<16x4xf32>
    %281 = arith.mulf %278, %278 : vector<16x4xf32>
    %282 = arith.mulf %279, %279 : vector<16x4xf32>
    %283 = arith.addf %281, %282 : vector<16x4xf32>
    %284 = arith.mulf %280, %280 : vector<16x4xf32>
    %285 = arith.addf %283, %284 : vector<16x4xf32>
    %cst_78 = arith.constant 9.99999993E-9 : f32
    %286 = vector.broadcast %cst_78 : f32 to vector<16x4xf32>
    %287 = arith.maximumf %285, %286 : vector<16x4xf32>
    %cst_79 = arith.constant dense<0.000000e+00> : vector<16xf32>
    %288 = vector.multi_reduction <add>, %287, %cst_79 [1] : vector<16x4xf32> to vector<16xf32>
    %289 = vector.shape_cast %288 : vector<16xf32> to vector<16x1xf32>
    %cst_80 = arith.constant 4.000000e+00 : f32
    %290 = vector.broadcast %cst_80 : f32 to vector<16x1xf32>
    %291 = arith.divf %289, %290 : vector<16x1xf32>
    %292 = math.rsqrt %291 : vector<16x1xf32>
    %293 = vector.shape_cast %255 : vector<48x4xf32> to vector<3x16x4xf32>
    %294 = vector.shape_cast %292 : vector<16x1xf32> to vector<1x16x1xf32>
    %295 = vector.broadcast %294 : vector<1x16x1xf32> to vector<3x16x4xf32>
    %296 = arith.mulf %293, %295 : vector<3x16x4xf32>
    %297 = vector.shape_cast %296 : vector<3x16x4xf32> to vector<48x4xf32>
    %298 = vector.extract_strided_slice %297 {offsets = [0, 0], sizes = [16, 4], strides = [1, 1]} : vector<48x4xf32> to vector<16x4xf32>
    %299 = vector.extract_strided_slice %297 {offsets = [16, 0], sizes = [16, 4], strides = [1, 1]} : vector<48x4xf32> to vector<16x4xf32>
    %300 = vector.extract_strided_slice %297 {offsets = [32, 0], sizes = [16, 4], strides = [1, 1]} : vector<48x4xf32> to vector<16x4xf32>
    %cst_81 = arith.constant 0.000000e+00 : f32
    %301 = vector.broadcast %cst_81 : f32 to vector<16x100xf32>
    %302 = tpu.concatenate %277, %298, %299, %300, %301 in 1 : vector<16x16xf32>, vector<16x4xf32>, vector<16x4xf32>, vector<16x4xf32>, vector<16x100xf32> -> vector<16x128xf32>
    %c0_82 = arith.constant 0 : index
    %c0_83 = arith.constant 0 : index
    %303 = vector.load %arg6[%c0_82, %c0_83] : memref<16x128xf32, #tpu.memory_space<vmem>>, vector<16x128xf32>
    tpu.vector_store %arg6[%c0_82, %c0_83], %302 {strides = array<i32>} : memref<16x128xf32, #tpu.memory_space<vmem>>, vector<16x128xf32>,
    return
  }
}

</mosaic_0001>

<llo_original>
// kernel: gvp_conv_layer.1
$region0: #{gvp_conv_layer.1}
  #allocation0 [shape = 'u32[]', space=smem, size = 0x4, offset = 0x4, fixed_abs, tag = 'smem constant byte address 0x4 - core index']
  #allocation1 [shape = 'u32[144,128]{1,0:T(1,128)}', space=vmem, size = 0x12000, scoped, tag = 'internal scratch']
  %s0 = inlined_call_operand.vmem [shape: bf16[128,40], index: 0, kind: input, shape index: {}]
  %s1 = inlined_call_operand.vmem [shape: f32[64,16], index: 1, kind: input, shape index: {}]
  %s2 = inlined_call_operand.vmem [shape: f32[16,32], index: 2, kind: input, shape index: {}]
  %s3 = inlined_call_operand.vmem [shape: f32[16,1], index: 3, kind: input, shape index: {}]
  %s4 = inlined_call_operand.vmem [shape: bf16[400,64], index: 4, kind: input, shape index: {}]
  %s5 = inlined_call_operand.vmem [shape: f32[9,64], index: 5, kind: input, shape index: {}]
  %s6 = inlined_call_operand.vmem [shape: f32[16,128], index: 6, kind: output, shape index: {}]
  %s7 = sld [smem:[#allocation0]]
  $region34: #{gvp_conv_layer.1} parent=0
    _
  %s9 = ssub.s32 1, %s7
  %s10 = scalar_select 0, %s9, %s7
  // Predicated region
  $region2: #{gvp_conv_layer.1} parent=0 // pred_check
    _
  $region3: #{gvp_conv_layer.1} parent=0 // pred_check_branch
    %12 = sbr.rel (0) target = $region5
  $region4: #{gvp_conv_layer.1} parent=0 // pred_region
    _
  $region5: #{gvp_conv_layer.1} parent=0 // pred_fallthru
    _
  // Predicated region
  $region6: #{gvp_conv_layer.1} parent=0 // pred_check
    _
  $region7: #{gvp_conv_layer.1} parent=0 // pred_check_branch
    %14 = sbr.rel (0) target = $region9
  $region8: #{gvp_conv_layer.1} parent=0 // pred_region
    _
  $region9: #{gvp_conv_layer.1} parent=0 // pred_fallthru
    _
  // Predicated region
  $region10: #{gvp_conv_layer.1} parent=0 // pred_check
    _
  $region11: #{gvp_conv_layer.1} parent=0 // pred_check_branch
    %16 = sbr.rel (0) target = $region13
  $region12: #{gvp_conv_layer.1} parent=0 // pred_region
    _
  $region13: #{gvp_conv_layer.1} parent=0 // pred_fallthru
    _
  // Predicated region
  $region14: #{gvp_conv_layer.1} parent=0 // pred_check
    _
  $region15: #{gvp_conv_layer.1} parent=0 // pred_check_branch
    %18 = sbr.rel (0) target = $region17
  $region16: #{gvp_conv_layer.1} parent=0 // pred_region
    _
  $region17: #{gvp_conv_layer.1} parent=0 // pred_fallthru
    _
  // Predicated region
  $region18: #{gvp_conv_layer.1} parent=0 // pred_check
    _
  $region19: #{gvp_conv_layer.1} parent=0 // pred_check_branch
    %20 = sbr.rel (0) target = $region21
  $region20: #{gvp_conv_layer.1} parent=0 // pred_region
    _
  $region21: #{gvp_conv_layer.1} parent=0 // pred_fallthru
    _
  // Predicated region
  $region22: #{gvp_conv_layer.1} parent=0 // pred_check
    _
  $region23: #{gvp_conv_layer.1} parent=0 // pred_check_branch
    %22 = sbr.rel (0) target = $region25
  $region24: #{gvp_conv_layer.1} parent=0 // pred_region
    _
  $region25: #{gvp_conv_layer.1} parent=0 // pred_fallthru
    _
  %v24 = vld [vmem:[%s0] sm:$0xf]
  %v25 = vld [vmem:[%s0 + $0x4] sm:$0xf]
  %v26 = vld [vmem:[%s0 + $0x8] sm:$0xf]
  %v27 = vld [vmem:[%s0 + $0xc] sm:$0xf]
  %v28 = vld [vmem:[%s0 + $0x10] sm:$0xf]
  %v29 = vld [vmem:[%s0 + $0x14] sm:$0xf]
  %v30 = vld [vmem:[%s0 + $0x18] sm:$0xf]
  %v31 = vld [vmem:[%s0 + $0x1c] sm:$0xf]
  %v32 = vld [vmem:[%s0 + $0x20] sm:$0xf]
  %v33 = vld [vmem:[%s0 + $0x24] sm:$0xf]
  %v34 = vld [vmem:[%s0 + $0x28] sm:$0xf]
  %v35 = vld [vmem:[%s0 + $0x2c] sm:$0xf]
  %v36 = vld [vmem:[%s0 + $0x30] sm:$0xf]
  %v37 = vld [vmem:[%s0 + $0x34] sm:$0xf]
  %v38 = vld [vmem:[%s0 + $0x38] sm:$0xf]
  %v39 = vld [vmem:[%s0 + $0x3c] sm:$0xf]
  %v40 = vld [vmem:[%s4] sm:$0xf]
  %v41 = vld [vmem:[%s4 + $0x4] sm:$0x1]
  %v54 = vunpack.c.l.b16 %v28
  %v55 = vunpack.c.l.b16 %v29
  %v56 = vunpack.c.l.b16 %v30
  %v57 = vunpack.c.l.b16 %v31
  %v58 = vunpack.c.l.b16 %v32
  %v59 = vunpack.c.l.b16 %v33
  %v60 = vunpack.c.l.b16 %v34
  %v61 = vunpack.c.l.b16 %v35
  %v62 = vunpack.c.l.b16 %v36
  %v63 = vunpack.c.l.b16 %v37
  %v64 = vunpack.c.l.b16 %v38
  %v65 = vunpack.c.l.b16 %v39
  %v66 = vpack.c.b16 %v55, %v54
  %v67 = vpack.c.b16 %v57, %v56
  %v68 = vpack.c.b16 %v59, %v58
  %v69 = vpack.c.b16 %v61, %v60
  %v70 = vpack.c.b16 %v63, %v62
  %v71 = vpack.c.b16 %v65, %v64
  %v74 = vunpack.c.l.b16 %v40
  %v75 = vunpack.c.l.b16 %v41
  %v76 = vpack.c.b16 %v75, %v74
  %vm77 = vcmask 80896
  %v79 = vsel %vm77, %v66, 0
  %v82 = vsel %vm77, %v67, 0
  %v85 = vsel %vm77, %v68, 0
  %v88 = vsel %vm77, %v69, 0
  %v91 = vsel %vm77, %v70, 0
  %v94 = vsel %vm77, %v71, 0
  %vm96 = vcmask 1044480
  %v98 = vsel %vm96, %v76, 0
  %100 = vmatprep.subr.bf16.mxu0 0
  %101 = vmatpush1.bf16.msra.mxu0 %v98
  %102 = vmatprep.subr.bf16.mxu0 0
  %103 = vmatpush1.bf16.msra.mxu0 0
  %104 = vmatprep.subr.bf16.mxu0 0
  %105 = vmatpush1.bf16.msra.mxu0 0
  %106 = vmatprep.subr.bf16.mxu0 0
  %107 = vmatpush1.bf16.msra.mxu0 0
  %108 = vmatprep.subr.bf16.mxu0 0
  %109 = vmatpush1.bf16.msra.mxu0 0
  %110 = vmatprep.subr.bf16.mxu0 0
  %111 = vmatpush1.bf16.msra.mxu0 0
  %112 = vmatprep.subr.bf16.mxu0 0
  %113 = vmatpush1.bf16.msra.mxu0 0
  %114 = vmatprep.subr.bf16.mxu0 0
  %115 = vmatpush1.bf16.msra.mxu0 0
  %116 = vmatprep.subr.bf16.mxu0 0
  %117 = vmatpush1.bf16.msra.mxu0 0
  %118 = vmatprep.subr.bf16.mxu0 0
  %119 = vmatpush1.bf16.msra.mxu0 0
  %120 = vmatprep.subr.bf16.mxu0 0
  %121 = vmatpush1.bf16.msra.mxu0 0
  %122 = vmatprep.subr.bf16.mxu0 0
  %123 = vmatpush1.bf16.msra.mxu0 0
  %124 = vmatprep.subr.bf16.mxu0 0
  %125 = vmatpush1.bf16.msra.mxu0 0
  %126 = vmatprep.subr.bf16.mxu0 0
  %127 = vmatpush1.bf16.msra.mxu0 0
  %128 = vmatprep.subr.bf16.mxu0 0
  %129 = vmatpush1.bf16.msra.mxu0 0
  %130 = vmatprep.subr.bf16.mxu0 0
  %131 = vmatpush1.bf16.msra.mxu0 0
  %132 = vmatprep.mubr.bf16.mxu0 0
  %133 = vmatmul.mubr.bf16.gmra.mrb[0].mxu0 %v79
  %v134 = vpop.f32.mrb[0].mxu0
  %v135 = vadd.f32 0.0, %v134
  %v136 = vpop.f32.mrb[0].mxu0
  %v137 = vpop.f32.mrb[0].mxu0
  %v138 = vadd.f32 0.0, %v137
  %v139 = vpop.f32.mrb[0].mxu0
  %140 = vmatprep.mubr.bf16.mxu0 0
  %141 = vmatmul.mubr.bf16.gmra.mrb[0].mxu0 %v82
  %v142 = vpop.f32.mrb[0].mxu0
  %v143 = vadd.f32 0.0, %v142
  %v144 = vpop.f32.mrb[0].mxu0
  %v145 = vpop.f32.mrb[0].mxu0
  %v146 = vadd.f32 0.0, %v145
  %v147 = vpop.f32.mrb[0].mxu0
  %148 = vmatprep.mubr.bf16.mxu0 0
  %149 = vmatmul.mubr.bf16.gmra.mrb[0].mxu0 %v85
  %v150 = vpop.f32.mrb[0].mxu0
  %v151 = vadd.f32 0.0, %v150
  %v152 = vpop.f32.mrb[0].mxu0
  %v153 = vpop.f32.mrb[0].mxu0
  %v154 = vadd.f32 0.0, %v153
  %v155 = vpop.f32.mrb[0].mxu0
  %156 = vmatprep.mubr.bf16.mxu0 0
  %157 = vmatmul.mubr.bf16.gmra.mrb[0].mxu0 %v88
  %v158 = vpop.f32.mrb[0].mxu0
  %v159 = vadd.f32 0.0, %v158
  %v160 = vpop.f32.mrb[0].mxu0
  %v161 = vpop.f32.mrb[0].mxu0
  %v162 = vadd.f32 0.0, %v161
  %v163 = vpop.f32.mrb[0].mxu0
  %164 = vmatprep.mubr.bf16.mxu0 0
  %165 = vmatmul.mubr.bf16.gmra.mrb[0].mxu0 %v91
  %v166 = vpop.f32.mrb[0].mxu0
  %v167 = vadd.f32 0.0, %v166
  %v168 = vpop.f32.mrb[0].mxu0
  %v169 = vpop.f32.mrb[0].mxu0
  %v170 = vadd.f32 0.0, %v169
  %v171 = vpop.f32.mrb[0].mxu0
  %172 = vmatprep.mubr.bf16.mxu0 0
  %173 = vmatmul.mubr.bf16.gmra.mrb[0].mxu0 %v94
  %v174 = vpop.f32.mrb[0].mxu0
  %v175 = vadd.f32 0.0, %v174
  %v176 = vpop.f32.mrb[0].mxu0
  %v177 = vpop.f32.mrb[0].mxu0
  %v178 = vadd.f32 0.0, %v177
  %v179 = vpop.f32.mrb[0].mxu0
  %180 = vdwg.mxu0
  %v181 = vmul.f32 %v135, %v135
  %v182 = vmul.f32 %v138, %v138
  %v183 = vmul.f32 %v143, %v143
  %v184 = vmul.f32 %v146, %v146
  %v185 = vmul.f32 %v151, %v151
  %v186 = vmul.f32 %v154, %v154
  %v187 = vmul.f32 %v159, %v159
  %v188 = vmul.f32 %v162, %v162
  %v189 = vadd.f32 %v181, %v185
  %v190 = vadd.f32 %v182, %v186
  %v191 = vadd.f32 %v183, %v187
  %v192 = vadd.f32 %v184, %v188
  %v193 = vmul.f32 %v167, %v167
  %v194 = vmul.f32 %v170, %v170
  %v195 = vmul.f32 %v175, %v175
  %v196 = vmul.f32 %v178, %v178
  %v197 = vadd.f32 %v189, %v193
  %v198 = vadd.f32 %v190, %v194
  %v199 = vadd.f32 %v191, %v195
  %v200 = vadd.f32 %v192, %v196
  %v201 = vmax.f32 %v197, 1e-08
  %v202 = vmax.f32 %v198, 1e-08
  %v203 = vmax.f32 %v199, 1e-08
  %v204 = vmax.f32 %v200, 1e-08
  %v205 = vrsqrt.pop %v201
  %v206 = vmul.f32 %v201, %v205
  %vm207 = vcmp.eq.f32.partialorder %v201, inf
  %v208 = vsel %vm207, %v201, %v206
  %vm209 = vcmp.eq.f32.partialorder %v201, 0.0
  %v210 = vand.u32 %v201, 2147483648
  %v211 = vsel %vm209, %v210, %v208
  %v212 = vrsqrt.pop %v202
  %v213 = vmul.f32 %v202, %v212
  %vm214 = vcmp.eq.f32.partialorder %v202, inf
  %v215 = vsel %vm214, %v202, %v213
  %vm216 = vcmp.eq.f32.partialorder %v202, 0.0
  %v217 = vand.u32 %v202, 2147483648
  %v218 = vsel %vm216, %v217, %v215
  %v219 = vrsqrt.pop %v203
  %v220 = vmul.f32 %v203, %v219
  %vm221 = vcmp.eq.f32.partialorder %v203, inf
  %v222 = vsel %vm221, %v203, %v220
  %vm223 = vcmp.eq.f32.partialorder %v203, 0.0
  %v224 = vand.u32 %v203, 2147483648
  %v225 = vsel %vm223, %v224, %v222
  %v226 = vrsqrt.pop %v204
  %v227 = vmul.f32 %v204, %v226
  %vm228 = vcmp.eq.f32.partialorder %v204, inf
  %v229 = vsel %vm228, %v204, %v227
  %vm230 = vcmp.eq.f32.partialorder %v204, 0.0
  %v231 = vand.u32 %v204, 2147483648
  %v232 = vsel %vm230, %v231, %v229
  %v233 = vpack.c.bf16 %v218, %v211
  %v234 = vpack.c.bf16 %v232, %v225
  %v239 = vunpack.c.l.b16 %v24
  %v240 = vunpack.c.l.b16 %v25
  %v241 = vunpack.c.l.b16 %v26
  %v242 = vunpack.c.l.b16 %v27
  %v243 = vpack.c.b16 %v240, %v239
  %v244 = vpack.c.b16 %v242, %v241
  %247 = vrot.lane.b32.xlu0 %v233, 40
  %v248 = vpop.permute.xlu0 %247
  %249 = vrot.lane.b32.xlu0 %v234, 40
  %v250 = vpop.permute.xlu0 %249
  %vm251 = vcmask 326656
  %v254 = vsel %vm251, %v243, %v248
  %v257 = vsel %vm251, %v244, %v250
  %v258 = vld [vmem:[%s4 + $0x8] sm:$0xf]
  %v259 = vld [vmem:[%s4 + $0xc] sm:$0xf]
  %v260 = vld [vmem:[%s4 + $0x10] sm:$0xf]
  %v261 = vld [vmem:[%s4 + $0x14] sm:$0xf]
  %v262 = vld [vmem:[%s4 + $0x18] sm:$0xf]
  %v263 = vld [vmem:[%s4 + $0x1c] sm:$0xf]
  %v264 = vld [vmem:[%s4 + $0x20] sm:$0x1]
  %v265 = vld [vmem:[%s5] sm:$0x1]
  %v266 = vlaneseq
  %v267 = vshrl.u32 %v266, 7
  %v268 = vsub.s32 0, %v267
  %v269 = vrot.slane %v265, %v268
  %v277 = vunpack.c.l.b16 %v258
  %v278 = vunpack.c.l.b16 %v259
  %v279 = vunpack.c.l.b16 %v260
  %v280 = vunpack.c.l.b16 %v261
  %v281 = vunpack.c.l.b16 %v262
  %v282 = vunpack.c.l.b16 %v263
  %v283 = vunpack.c.l.b16 %v264
  %v284 = vpack.c.b16 %v278, %v277
  %v285 = vpack.c.b16 %v280, %v279
  %v286 = vpack.c.b16 %v282, %v281
  %v287 = vpack.c.b16 %v283, %v283
  %vm291 = vcmask 408576
  %v292 = vsel %vm291, %v254, 0
  %v294 = vsel %vm291, %v257, 0
  %vm296 = vcmask 1040384
  %v298 = vsel %vm296, %v287, 0
  %300 = vmatprep.subr.bf16.mxu0 0
  %301 = vmatpush1.bf16.msra.mxu0 %v284
  %302 = vmatprep.subr.bf16.mxu0 0
  %303 = vmatpush1.bf16.msra.mxu0 %v285
  %304 = vmatprep.subr.bf16.mxu0 0
  %305 = vmatpush1.bf16.msra.mxu0 %v286
  %306 = vmatprep.subr.bf16.mxu0 0
  %307 = vmatpush1.bf16.msra.mxu0 %v298
  %308 = vmatprep.subr.bf16.mxu0 0
  %309 = vmatpush1.bf16.msra.mxu0 0
  %310 = vmatprep.subr.bf16.mxu0 0
  %311 = vmatpush1.bf16.msra.mxu0 0
  %312 = vmatprep.subr.bf16.mxu0 0
  %313 = vmatpush1.bf16.msra.mxu0 0
  %314 = vmatprep.subr.bf16.mxu0 0
  %315 = vmatpush1.bf16.msra.mxu0 0
  %316 = vmatprep.subr.bf16.mxu0 0
  %317 = vmatpush1.bf16.msra.mxu0 0
  %318 = vmatprep.subr.bf16.mxu0 0
  %319 = vmatpush1.bf16.msra.mxu0 0
  %320 = vmatprep.subr.bf16.mxu0 0
  %321 = vmatpush1.bf16.msra.mxu0 0
  %322 = vmatprep.subr.bf16.mxu0 0
  %323 = vmatpush1.bf16.msra.mxu0 0
  %324 = vmatprep.subr.bf16.mxu0 0
  %325 = vmatpush1.bf16.msra.mxu0 0
  %326 = vmatprep.subr.bf16.mxu0 0
  %327 = vmatpush1.bf16.msra.mxu0 0
  %328 = vmatprep.subr.bf16.mxu0 0
  %329 = vmatpush1.bf16.msra.mxu0 0
  %330 = vmatprep.subr.bf16.mxu0 0
  %331 = vmatpush1.bf16.msra.mxu0 0
  %332 = vmatprep.mubr.bf16.mxu0 0
  %333 = vmatmul.mubr.bf16.gmra.mrb[0].mxu0 %v292
  %v334 = vpop.f32.mrb[0].mxu0
  %v335 = vadd.f32 %v269, %v334
  %v336 = vpop.f32.mrb[0].mxu0
  %v337 = vpop.f32.mrb[0].mxu0
  %v338 = vadd.f32 %v269, %v337
  %v339 = vpop.f32.mrb[0].mxu0
  %340 = vmatprep.mubr.bf16.mxu0 0
  %341 = vmatmul.mubr.bf16.gmra.mrb[0].mxu0 %v294
  %v342 = vpop.f32.mrb[0].mxu0
  %v343 = vadd.f32 %v269, %v342
  %v344 = vpop.f32.mrb[0].mxu0
  %v345 = vpop.f32.mrb[0].mxu0
  %v346 = vadd.f32 %v269, %v345
  %v347 = vpop.f32.mrb[0].mxu0
  %348 = vdwg.mxu0
  %v349 = vld [vmem:[%s4 + $0x28] sm:$0xf]
  %v350 = vld [vmem:[%s4 + $0x2c] sm:$0x1]
  %v351 = vpack.c.bf16 %v138, %v135
  %v352 = vpack.c.bf16 %v146, %v143
  %v353 = vpack.c.bf16 %v154, %v151
  %v354 = vpack.c.bf16 %v162, %v159
  %v355 = vpack.c.bf16 %v170, %v167
  %v356 = vpack.c.bf16 %v178, %v175
  %v359 = vunpack.c.l.b16 %v349
  %v360 = vunpack.c.l.b16 %v350
  %v361 = vpack.c.b16 %v360, %v359
  %v363 = vsel %vm77, %v351, 0
  %v366 = vsel %vm77, %v352, 0
  %v369 = vsel %vm77, %v353, 0
  %v372 = vsel %vm77, %v354, 0
  %v375 = vsel %vm77, %v355, 0
  %v378 = vsel %vm77, %v356, 0
  %v381 = vsel %vm96, %v361, 0
  %383 = vmatprep.subr.bf16.mxu0 0
  %384 = vmatpush1.bf16.msra.mxu0 %v381
  %385 = vmatprep.subr.bf16.mxu0 0
  %386 = vmatpush1.bf16.msra.mxu0 0
  %387 = vmatprep.subr.bf16.mxu0 0
  %388 = vmatpush1.bf16.msra.mxu0 0
  %389 = vmatprep.subr.bf16.mxu0 0
  %390 = vmatpush1.bf16.msra.mxu0 0
  %391 = vmatprep.subr.bf16.mxu0 0
  %392 = vmatpush1.bf16.msra.mxu0 0
  %393 = vmatprep.subr.bf16.mxu0 0
  %394 = vmatpush1.bf16.msra.mxu0 0
  %395 = vmatprep.subr.bf16.mxu0 0
  %396 = vmatpush1.bf16.msra.mxu0 0
  %397 = vmatprep.subr.bf16.mxu0 0
  %398 = vmatpush1.bf16.msra.mxu0 0
  %399 = vmatprep.subr.bf16.mxu0 0
  %400 = vmatpush1.bf16.msra.mxu0 0
  %401 = vmatprep.subr.bf16.mxu0 0
  %402 = vmatpush1.bf16.msra.mxu0 0
  %403 = vmatprep.subr.bf16.mxu0 0
  %404 = vmatpush1.bf16.msra.mxu0 0
  %405 = vmatprep.subr.bf16.mxu0 0
  %406 = vmatpush1.bf16.msra.mxu0 0
  %407 = vmatprep.subr.bf16.mxu0 0
  %408 = vmatpush1.bf16.msra.mxu0 0
  %409 = vmatprep.subr.bf16.mxu0 0
  %410 = vmatpush1.bf16.msra.mxu0 0
  %411 = vmatprep.subr.bf16.mxu0 0
  %412 = vmatpush1.bf16.msra.mxu0 0
  %413 = vmatprep.subr.bf16.mxu0 0
  %414 = vmatpush1.bf16.msra.mxu0 0
  %415 = vmatprep.mubr.bf16.mxu0 0
  %416 = vmatmul.mubr.bf16.gmra.mrb[0].mxu0 %v363
  %v417 = vpop.f32.mrb[0].mxu0
  %v418 = vadd.f32 0.0, %v417
  %v419 = vpop.f32.mrb[0].mxu0
  %v420 = vpop.f32.mrb[0].mxu0
  %v421 = vadd.f32 0.0, %v420
  %v422 = vpop.f32.mrb[0].mxu0
  %423 = vmatprep.mubr.bf16.mxu0 0
  %424 = vmatmul.mubr.bf16.gmra.mrb[0].mxu0 %v366
  %v425 = vpop.f32.mrb[0].mxu0
  %v426 = vadd.f32 0.0, %v425
  %v427 = vpop.f32.mrb[0].mxu0
  %v428 = vpop.f32.mrb[0].mxu0
  %v429 = vadd.f32 0.0, %v428
  %v430 = vpop.f32.mrb[0].mxu0
  %431 = vmatprep.mubr.bf16.mxu0 0
  %432 = vmatmul.mubr.bf16.gmra.mrb[0].mxu0 %v369
  %v433 = vpop.f32.mrb[0].mxu0
  %v434 = vadd.f32 0.0, %v433
  %v435 = vpop.f32.mrb[0].mxu0
  %v436 = vpop.f32.mrb[0].mxu0
  %v437 = vadd.f32 0.0, %v436
  %v438 = vpop.f32.mrb[0].mxu0
  %439 = vmatprep.mubr.bf16.mxu0 0
  %440 = vmatmul.mubr.bf16.gmra.mrb[0].mxu0 %v372
  %v441 = vpop.f32.mrb[0].mxu0
  %v442 = vadd.f32 0.0, %v441
  %v443 = vpop.f32.mrb[0].mxu0
  %v444 = vpop.f32.mrb[0].mxu0
  %v445 = vadd.f32 0.0, %v444
  %v446 = vpop.f32.mrb[0].mxu0
  %447 = vmatprep.mubr.bf16.mxu0 0
  %448 = vmatmul.mubr.bf16.gmra.mrb[0].mxu0 %v375
  %v449 = vpop.f32.mrb[0].mxu0
  %v450 = vadd.f32 0.0, %v449
  %v451 = vpop.f32.mrb[0].mxu0
  %v452 = vpop.f32.mrb[0].mxu0
  %v453 = vadd.f32 0.0, %v452
  %v454 = vpop.f32.mrb[0].mxu0
  %455 = vmatprep.mubr.bf16.mxu0 0
  %456 = vmatmul.mubr.bf16.gmra.mrb[0].mxu0 %v378
  %v457 = vpop.f32.mrb[0].mxu0
  %v458 = vadd.f32 0.0, %v457
  %v459 = vpop.f32.mrb[0].mxu0
  %v460 = vpop.f32.mrb[0].mxu0
  %v461 = vadd.f32 0.0, %v460
  %v462 = vpop.f32.mrb[0].mxu0
  %463 = vdwg.mxu0
  %v464 = vmul.f32 %v418, %v418
  %v465 = vmul.f32 %v421, %v421
  %v466 = vmul.f32 %v426, %v426
  %v467 = vmul.f32 %v429, %v429
  %v468 = vmul.f32 %v434, %v434
  %v469 = vmul.f32 %v437, %v437
  %v470 = vmul.f32 %v442, %v442
  %v471 = vmul.f32 %v445, %v445
  %v472 = vadd.f32 %v464, %v468
  %v473 = vadd.f32 %v465, %v469
  %v474 = vadd.f32 %v466, %v470
  %v475 = vadd.f32 %v467, %v471
  %v476 = vmul.f32 %v450, %v450
  %v477 = vmul.f32 %v453, %v453
  %v478 = vmul.f32 %v458, %v458
  %v479 = vmul.f32 %v461, %v461
  %v480 = vadd.f32 %v472, %v476
  %v481 = vadd.f32 %v473, %v477
  %v482 = vadd.f32 %v474, %v478
  %v483 = vadd.f32 %v475, %v479
  %v484 = vmax.f32 %v480, 1e-08
  %v485 = vmax.f32 %v481, 1e-08
  %v486 = vmax.f32 %v482, 1e-08
  %v487 = vmax.f32 %v483, 1e-08
  %v488 = vrsqrt.pop %v484
  %v489 = vmul.f32 %v484, %v488
  %vm490 = vcmp.eq.f32.partialorder %v484, inf
  %v491 = vsel %vm490, %v484, %v489
  %vm492 = vcmp.eq.f32.partialorder %v484, 0.0
  %v493 = vand.u32 %v484, 2147483648
  %v494 = vsel %vm492, %v493, %v491
  %v495 = vrsqrt.pop %v485
  %v496 = vmul.f32 %v485, %v495
  %vm497 = vcmp.eq.f32.partialorder %v485, inf
  %v498 = vsel %vm497, %v485, %v496
  %vm499 = vcmp.eq.f32.partialorder %v485, 0.0
  %v500 = vand.u32 %v485, 2147483648
  %v501 = vsel %vm499, %v500, %v498
  %v502 = vrsqrt.pop %v486
  %v503 = vmul.f32 %v486, %v502
  %vm504 = vcmp.eq.f32.partialorder %v486, inf
  %v505 = vsel %vm504, %v486, %v503
  %vm506 = vcmp.eq.f32.partialorder %v486, 0.0
  %v507 = vand.u32 %v486, 2147483648
  %v508 = vsel %vm506, %v507, %v505
  %v509 = vrsqrt.pop %v487
  %v510 = vmul.f32 %v487, %v509
  %vm511 = vcmp.eq.f32.partialorder %v487, inf
  %v512 = vsel %vm511, %v487, %v510
  %vm513 = vcmp.eq.f32.partialorder %v487, 0.0
  %v514 = vand.u32 %v487, 2147483648
  %v515 = vsel %vm513, %v514, %v512
  %v516 = vxor.u32 %v494, 2147483648
  %v517 = vxor.u32 %v501, 2147483648
  %v518 = vxor.u32 %v508, 2147483648
  %v519 = vxor.u32 %v515, 2147483648
  %v520 = vmul.f32 %v516, 1.442695
  %v521 = vpow.pop %v520
  %v522 = vmul.f32 %v517, 1.442695
  %v523 = vpow.pop %v522
  %v524 = vmul.f32 %v518, 1.442695
  %v525 = vpow.pop %v524
  %v526 = vmul.f32 %v519, 1.442695
  %v527 = vpow.pop %v526
  %v528 = vadd.f32 %v521, 1.0
  %v529 = vadd.f32 %v523, 1.0
  %v530 = vadd.f32 %v525, 1.0
  %v531 = vadd.f32 %v527, 1.0
  %v532 = vrcp.pop %v528
  %v533 = vmul.f32 1.0, %v532
  %v534 = vrcp.pop %v529
  %v535 = vmul.f32 1.0, %v534
  %v536 = vrcp.pop %v530
  %v537 = vmul.f32 1.0, %v536
  %v538 = vrcp.pop %v531
  %v539 = vmul.f32 1.0, %v538
  %v540 = vmul.f32 %v418, %v533
  %v541 = vmul.f32 %v421, %v535
  %v542 = vmul.f32 %v426, %v537
  %v543 = vmul.f32 %v429, %v539
  %v544 = vmul.f32 %v434, %v533
  %v545 = vmul.f32 %v437, %v535
  %v546 = vmul.f32 %v442, %v537
  %v547 = vmul.f32 %v445, %v539
  %v548 = vmul.f32 %v450, %v533
  %v549 = vmul.f32 %v453, %v535
  %v550 = vmul.f32 %v458, %v537
  %v551 = vmul.f32 %v461, %v539
  %v552 = vmax.f32 %v335, 0.0
  %v553 = vmax.f32 %v338, 0.0
  %v554 = vmax.f32 %v343, 0.0
  %v555 = vmax.f32 %v346, 0.0
  %v556 = vld [vmem:[%s4 + $0x30] sm:$0x3]
  %v557 = vpack.c.bf16 %v541, %v540
  %v558 = vpack.c.bf16 %v543, %v542
  %v559 = vpack.c.bf16 %v545, %v544
  %v560 = vpack.c.bf16 %v547, %v546
  %v561 = vpack.c.bf16 %v549, %v548
  %v562 = vpack.c.bf16 %v551, %v550
  %vm563 = vcmask 31744
  %v565 = vsel %vm563, %v557, 0
  %v568 = vsel %vm563, %v558, 0
  %v571 = vsel %vm563, %v559, 0
  %v574 = vsel %vm563, %v560, 0
  %v577 = vsel %vm563, %v561, 0
  %v580 = vsel %vm563, %v562, 0
  %vm582 = vcmask 1041408
  %v584 = vsel %vm582, %v556, 0
  %586 = vmatprep.subr.bf16.mxu0 0
  %587 = vmatpush1.bf16.msra.mxu0 %v584
  %588 = vmatprep.subr.bf16.mxu0 0
  %589 = vmatpush1.bf16.msra.mxu0 0
  %590 = vmatprep.subr.bf16.mxu0 0
  %591 = vmatpush1.bf16.msra.mxu0 0
  %592 = vmatprep.subr.bf16.mxu0 0
  %593 = vmatpush1.bf16.msra.mxu0 0
  %594 = vmatprep.subr.bf16.mxu0 0
  %595 = vmatpush1.bf16.msra.mxu0 0
  %596 = vmatprep.subr.bf16.mxu0 0
  %597 = vmatpush1.bf16.msra.mxu0 0
  %598 = vmatprep.subr.bf16.mxu0 0
  %599 = vmatpush1.bf16.msra.mxu0 0
  %600 = vmatprep.subr.bf16.mxu0 0
  %601 = vmatpush1.bf16.msra.mxu0 0
  %602 = vmatprep.subr.bf16.mxu0 0
  %603 = vmatpush1.bf16.msra.mxu0 0
  %604 = vmatprep.subr.bf16.mxu0 0
  %605 = vmatpush1.bf16.msra.mxu0 0
  %606 = vmatprep.subr.bf16.mxu0 0
  %607 = vmatpush1.bf16.msra.mxu0 0
  %608 = vmatprep.subr.bf16.mxu0 0
  %609 = vmatpush1.bf16.msra.mxu0 0
  %610 = vmatprep.subr.bf16.mxu0 0
  %611 = vmatpush1.bf16.msra.mxu0 0
  %612 = vmatprep.subr.bf16.mxu0 0
  %613 = vmatpush1.bf16.msra.mxu0 0
  %614 = vmatprep.subr.bf16.mxu0 0
  %615 = vmatpush1.bf16.msra.mxu0 0
  %616 = vmatprep.subr.bf16.mxu0 0
  %617 = vmatpush1.bf16.msra.mxu0 0
  %618 = vmatprep.mubr.bf16.mxu0 0
  %619 = vmatmul.mubr.bf16.gmra.mrb[0].mxu0 %v565
  %v620 = vpop.f32.mrb[0].mxu0
  %v621 = vadd.f32 0.0, %v620
  %v622 = vpop.f32.mrb[0].mxu0
  %v623 = vpop.f32.mrb[0].mxu0
  %v624 = vadd.f32 0.0, %v623
  %v625 = vpop.f32.mrb[0].mxu0
  %626 = vmatprep.mubr.bf16.mxu0 0
  %627 = vmatmul.mubr.bf16.gmra.mrb[0].mxu0 %v568
  %v628 = vpop.f32.mrb[0].mxu0
  %v629 = vadd.f32 0.0, %v628
  %v630 = vpop.f32.mrb[0].mxu0
  %v631 = vpop.f32.mrb[0].mxu0
  %v632 = vadd.f32 0.0, %v631
  %v633 = vpop.f32.mrb[0].mxu0
  %634 = vmatprep.mubr.bf16.mxu0 0
  %635 = vmatmul.mubr.bf16.gmra.mrb[0].mxu0 %v571
  %v636 = vpop.f32.mrb[0].mxu0
  %v637 = vadd.f32 0.0, %v636
  %v638 = vpop.f32.mrb[0].mxu0
  %v639 = vpop.f32.mrb[0].mxu0
  %v640 = vadd.f32 0.0, %v639
  %v641 = vpop.f32.mrb[0].mxu0
  %642 = vmatprep.mubr.bf16.mxu0 0
  %643 = vmatmul.mubr.bf16.gmra.mrb[0].mxu0 %v574
  %v644 = vpop.f32.mrb[0].mxu0
  %v645 = vadd.f32 0.0, %v644
  %v646 = vpop.f32.mrb[0].mxu0
  %v647 = vpop.f32.mrb[0].mxu0
  %v648 = vadd.f32 0.0, %v647
  %v649 = vpop.f32.mrb[0].mxu0
  %650 = vmatprep.mubr.bf16.mxu0 0
  %651 = vmatmul.mubr.bf16.gmra.mrb[0].mxu0 %v577
  %v652 = vpop.f32.mrb[0].mxu0
  %v653 = vadd.f32 0.0, %v652
  %v654 = vpop.f32.mrb[0].mxu0
  %v655 = vpop.f32.mrb[0].mxu0
  %v656 = vadd.f32 0.0, %v655
  %v657 = vpop.f32.mrb[0].mxu0
  %658 = vmatprep.mubr.bf16.mxu0 0
  %659 = vmatmul.mubr.bf16.gmra.mrb[0].mxu0 %v580
  %v660 = vpop.f32.mrb[0].mxu0
  %v661 = vadd.f32 0.0, %v660
  %v662 = vpop.f32.mrb[0].mxu0
  %v663 = vpop.f32.mrb[0].mxu0
  %v664 = vadd.f32 0.0, %v663
  %v665 = vpop.f32.mrb[0].mxu0
  %666 = vdwg.mxu0
  %v667 = vmul.f32 %v621, %v621
  %v668 = vmul.f32 %v624, %v624
  %v669 = vmul.f32 %v629, %v629
  %v670 = vmul.f32 %v632, %v632
  %v671 = vmul.f32 %v637, %v637
  %v672 = vmul.f32 %v640, %v640
  %v673 = vmul.f32 %v645, %v645
  %v674 = vmul.f32 %v648, %v648
  %v675 = vadd.f32 %v667, %v671
  %v676 = vadd.f32 %v668, %v672
  %v677 = vadd.f32 %v669, %v673
  %v678 = vadd.f32 %v670, %v674
  %v679 = vmul.f32 %v653, %v653
  %v680 = vmul.f32 %v656, %v656
  %v681 = vmul.f32 %v661, %v661
  %v682 = vmul.f32 %v664, %v664
  %v683 = vadd.f32 %v675, %v679
  %v684 = vadd.f32 %v676, %v680
  %v685 = vadd.f32 %v677, %v681
  %v686 = vadd.f32 %v678, %v682
  %v687 = vmax.f32 %v683, 1e-08
  %v688 = vmax.f32 %v684, 1e-08
  %v689 = vmax.f32 %v685, 1e-08
  %v690 = vmax.f32 %v686, 1e-08
  %v691 = vrsqrt.pop %v687
  %v692 = vmul.f32 %v687, %v691
  %vm693 = vcmp.eq.f32.partialorder %v687, inf
  %v694 = vsel %vm693, %v687, %v692
  %vm695 = vcmp.eq.f32.partialorder %v687, 0.0
  %v696 = vand.u32 %v687, 2147483648
  %v697 = vsel %vm695, %v696, %v694
  %v698 = vrsqrt.pop %v688
  %v699 = vmul.f32 %v688, %v698
  %vm700 = vcmp.eq.f32.partialorder %v688, inf
  %v701 = vsel %vm700, %v688, %v699
  %vm702 = vcmp.eq.f32.partialorder %v688, 0.0
  %v703 = vand.u32 %v688, 2147483648
  %v704 = vsel %vm702, %v703, %v701
  %v705 = vrsqrt.pop %v689
  %v706 = vmul.f32 %v689, %v705
  %vm707 = vcmp.eq.f32.partialorder %v689, inf
  %v708 = vsel %vm707, %v689, %v706
  %vm709 = vcmp.eq.f32.partialorder %v689, 0.0
  %v710 = vand.u32 %v689, 2147483648
  %v711 = vsel %vm709, %v710, %v708
  %v712 = vrsqrt.pop %v690
  %v713 = vmul.f32 %v690, %v712
  %vm714 = vcmp.eq.f32.partialorder %v690, inf
  %v715 = vsel %vm714, %v690, %v713
  %vm716 = vcmp.eq.f32.partialorder %v690, 0.0
  %v717 = vand.u32 %v690, 2147483648
  %v718 = vsel %vm716, %v717, %v715
  %v719 = vpack.c.bf16 %v553, %v552
  %v720 = vpack.c.bf16 %v555, %v554
  %v721 = vpack.c.bf16 %v704, %v697
  %v722 = vpack.c.bf16 %v718, %v711
  %725 = vrot.lane.b32.xlu0 %v721, 16
  %v726 = vpop.permute.xlu0 %725
  %727 = vrot.lane.b32.xlu0 %v722, 16
  %v728 = vpop.permute.xlu0 %727
  %vm729 = vcmask 130048
  %v732 = vsel %vm729, %v719, %v726
  %v735 = vsel %vm729, %v720, %v728
  %v736 = vld [vmem:[%s4 + $0x38] sm:$0xf]
  %v737 = vld [vmem:[%s4 + $0x3c] sm:$0xf]
  %v738 = vld [vmem:[%s4 + $0x40] sm:$0x3]
  %v739 = vld [vmem:[%s5 + $0x1] sm:$0x1]
  %v740 = vlaneseq
  %v741 = vshrl.u32 %v740, 7
  %v742 = vsub.s32 0, %v741
  %v743 = vrot.slane %v739, %v742
  %v747 = vunpack.c.l.b16 %v736
  %v748 = vunpack.c.l.b16 %v737
  %v749 = vunpack.c.l.b16 %v738
  %v750 = vpack.c.b16 %v748, %v747
  %v751 = vpack.c.b16 %v749, %v749
  %vm753 = vcmask 162816
  %v754 = vsel %vm753, %v732, 0
  %v756 = vsel %vm753, %v735, 0
  %v759 = vsel %vm582, %v751, 0
  %761 = vmatprep.subr.bf16.mxu0 0
  %762 = vmatpush1.bf16.msra.mxu0 %v750
  %763 = vmatprep.subr.bf16.mxu0 0
  %764 = vmatpush1.bf16.msra.mxu0 %v759
  %765 = vmatprep.subr.bf16.mxu0 0
  %766 = vmatpush1.bf16.msra.mxu0 0
  %767 = vmatprep.subr.bf16.mxu0 0
  %768 = vmatpush1.bf16.msra.mxu0 0
  %769 = vmatprep.subr.bf16.mxu0 0
  %770 = vmatpush1.bf16.msra.mxu0 0
  %771 = vmatprep.subr.bf16.mxu0 0
  %772 = vmatpush1.bf16.msra.mxu0 0
  %773 = vmatprep.subr.bf16.mxu0 0
  %774 = vmatpush1.bf16.msra.mxu0 0
  %775 = vmatprep.subr.bf16.mxu0 0
  %776 = vmatpush1.bf16.msra.mxu0 0
  %777 = vmatprep.subr.bf16.mxu0 0
  %778 = vmatpush1.bf16.msra.mxu0 0
  %779 = vmatprep.subr.bf16.mxu0 0
  %780 = vmatpush1.bf16.msra.mxu0 0
  %781 = vmatprep.subr.bf16.mxu0 0
  %782 = vmatpush1.bf16.msra.mxu0 0
  %783 = vmatprep.subr.bf16.mxu0 0
  %784 = vmatpush1.bf16.msra.mxu0 0
  %785 = vmatprep.subr.bf16.mxu0 0
  %786 = vmatpush1.bf16.msra.mxu0 0
  %787 = vmatprep.subr.bf16.mxu0 0
  %788 = vmatpush1.bf16.msra.mxu0 0
  %789 = vmatprep.subr.bf16.mxu0 0
  %790 = vmatpush1.bf16.msra.mxu0 0
  %791 = vmatprep.subr.bf16.mxu0 0
  %792 = vmatpush1.bf16.msra.mxu0 0
  %793 = vmatprep.mubr.bf16.mxu0 0
  %794 = vmatmul.mubr.bf16.gmra.mrb[0].mxu0 %v754
  %v795 = vpop.f32.mrb[0].mxu0
  %v796 = vadd.f32 %v743, %v795
  %v797 = vpop.f32.mrb[0].mxu0
  %v798 = vpop.f32.mrb[0].mxu0
  %v799 = vadd.f32 %v743, %v798
  %v800 = vpop.f32.mrb[0].mxu0
  %801 = vmatprep.mubr.bf16.mxu0 0
  %802 = vmatmul.mubr.bf16.gmra.mrb[0].mxu0 %v756
  %v803 = vpop.f32.mrb[0].mxu0
  %v804 = vadd.f32 %v743, %v803
  %v805 = vpop.f32.mrb[0].mxu0
  %v806 = vpop.f32.mrb[0].mxu0
  %v807 = vadd.f32 %v743, %v806
  %v808 = vpop.f32.mrb[0].mxu0
  %809 = vdwg.mxu0
  %v810 = vld [vmem:[%s4 + $0x48] sm:$0x3]
  %v811 = vpack.c.bf16 %v624, %v621
  %v812 = vpack.c.bf16 %v632, %v629
  %v813 = vpack.c.bf16 %v640, %v637
  %v814 = vpack.c.bf16 %v648, %v645
  %v815 = vpack.c.bf16 %v656, %v653
  %v816 = vpack.c.bf16 %v664, %v661
  %v818 = vsel %vm563, %v811, 0
  %v821 = vsel %vm563, %v812, 0
  %v824 = vsel %vm563, %v813, 0
  %v827 = vsel %vm563, %v814, 0
  %v830 = vsel %vm563, %v815, 0
  %v833 = vsel %vm563, %v816, 0
  %v836 = vsel %vm582, %v810, 0
  %838 = vmatprep.subr.bf16.mxu0 0
  %839 = vmatpush1.bf16.msra.mxu0 %v836
  %840 = vmatprep.subr.bf16.mxu0 0
  %841 = vmatpush1.bf16.msra.mxu0 0
  %842 = vmatprep.subr.bf16.mxu0 0
  %843 = vmatpush1.bf16.msra.mxu0 0
  %844 = vmatprep.subr.bf16.mxu0 0
  %845 = vmatpush1.bf16.msra.mxu0 0
  %846 = vmatprep.subr.bf16.mxu0 0
  %847 = vmatpush1.bf16.msra.mxu0 0
  %848 = vmatprep.subr.bf16.mxu0 0
  %849 = vmatpush1.bf16.msra.mxu0 0
  %850 = vmatprep.subr.bf16.mxu0 0
  %851 = vmatpush1.bf16.msra.mxu0 0
  %852 = vmatprep.subr.bf16.mxu0 0
  %853 = vmatpush1.bf16.msra.mxu0 0
  %854 = vmatprep.subr.bf16.mxu0 0
  %855 = vmatpush1.bf16.msra.mxu0 0
  %856 = vmatprep.subr.bf16.mxu0 0
  %857 = vmatpush1.bf16.msra.mxu0 0
  %858 = vmatprep.subr.bf16.mxu0 0
  %859 = vmatpush1.bf16.msra.mxu0 0
  %860 = vmatprep.subr.bf16.mxu0 0
  %861 = vmatpush1.bf16.msra.mxu0 0
  %862 = vmatprep.subr.bf16.mxu0 0
  %863 = vmatpush1.bf16.msra.mxu0 0
  %864 = vmatprep.subr.bf16.mxu0 0
  %865 = vmatpush1.bf16.msra.mxu0 0
  %866 = vmatprep.subr.bf16.mxu0 0
  %867 = vmatpush1.bf16.msra.mxu0 0
  %868 = vmatprep.subr.bf16.mxu0 0
  %869 = vmatpush1.bf16.msra.mxu0 0
  %870 = vmatprep.mubr.bf16.mxu0 0
  %871 = vmatmul.mubr.bf16.gmra.mrb[0].mxu0 %v818
  %v872 = vpop.f32.mrb[0].mxu0
  %v873 = vadd.f32 0.0, %v872
  %v874 = vpop.f32.mrb[0].mxu0
  %v875 = vpop.f32.mrb[0].mxu0
  %v876 = vadd.f32 0.0, %v875
  %v877 = vpop.f32.mrb[0].mxu0
  %878 = vmatprep.mubr.bf16.mxu0 0
  %879 = vmatmul.mubr.bf16.gmra.mrb[0].mxu0 %v821
  %v880 = vpop.f32.mrb[0].mxu0
  %v881 = vadd.f32 0.0, %v880
  %v882 = vpop.f32.mrb[0].mxu0
  %v883 = vpop.f32.mrb[0].mxu0
  %v884 = vadd.f32 0.0, %v883
  %v885 = vpop.f32.mrb[0].mxu0
  %886 = vmatprep.mubr.bf16.mxu0 0
  %887 = vmatmul.mubr.bf16.gmra.mrb[0].mxu0 %v824
  %v888 = vpop.f32.mrb[0].mxu0
  %v889 = vadd.f32 0.0, %v888
  %v890 = vpop.f32.mrb[0].mxu0
  %v891 = vpop.f32.mrb[0].mxu0
  %v892 = vadd.f32 0.0, %v891
  %v893 = vpop.f32.mrb[0].mxu0
  %894 = vmatprep.mubr.bf16.mxu0 0
  %895 = vmatmul.mubr.bf16.gmra.mrb[0].mxu0 %v827
  %v896 = vpop.f32.mrb[0].mxu0
  %v897 = vadd.f32 0.0, %v896
  %v898 = vpop.f32.mrb[0].mxu0
  %v899 = vpop.f32.mrb[0].mxu0
  %v900 = vadd.f32 0.0, %v899
  %v901 = vpop.f32.mrb[0].mxu0
  %902 = vmatprep.mubr.bf16.mxu0 0
  %903 = vmatmul.mubr.bf16.gmra.mrb[0].mxu0 %v830
  %v904 = vpop.f32.mrb[0].mxu0
  %v905 = vadd.f32 0.0, %v904
  %v906 = vpop.f32.mrb[0].mxu0
  %v907 = vpop.f32.mrb[0].mxu0
  %v908 = vadd.f32 0.0, %v907
  %v909 = vpop.f32.mrb[0].mxu0
  %910 = vmatprep.mubr.bf16.mxu0 0
  %911 = vmatmul.mubr.bf16.gmra.mrb[0].mxu0 %v833
  %v912 = vpop.f32.mrb[0].mxu0
  %v913 = vadd.f32 0.0, %v912
  %v914 = vpop.f32.mrb[0].mxu0
  %v915 = vpop.f32.mrb[0].mxu0
  %v916 = vadd.f32 0.0, %v915
  %v917 = vpop.f32.mrb[0].mxu0
  %918 = vdwg.mxu0
  %v919 = vmul.f32 %v873, %v873
  %v920 = vmul.f32 %v876, %v876
  %v921 = vmul.f32 %v881, %v881
  %v922 = vmul.f32 %v884, %v884
  %v923 = vmul.f32 %v889, %v889
  %v924 = vmul.f32 %v892, %v892
  %v925 = vmul.f32 %v897, %v897
  %v926 = vmul.f32 %v900, %v900
  %v927 = vadd.f32 %v919, %v923
  %v928 = vadd.f32 %v920, %v924
  %v929 = vadd.f32 %v921, %v925
  %v930 = vadd.f32 %v922, %v926
  %v931 = vmul.f32 %v905, %v905
  %v932 = vmul.f32 %v908, %v908
  %v933 = vmul.f32 %v913, %v913
  %v934 = vmul.f32 %v916, %v916
  %v935 = vadd.f32 %v927, %v931
  %v936 = vadd.f32 %v928, %v932
  %v937 = vadd.f32 %v929, %v933
  %v938 = vadd.f32 %v930, %v934
  %v939 = vmax.f32 %v935, 1e-08
  %v940 = vmax.f32 %v936, 1e-08
  %v941 = vmax.f32 %v937, 1e-08
  %v942 = vmax.f32 %v938, 1e-08
  %v943 = vrsqrt.pop %v939
  %v944 = vmul.f32 %v939, %v943
  %vm945 = vcmp.eq.f32.partialorder %v939, inf
  %v946 = vsel %vm945, %v939, %v944
  %vm947 = vcmp.eq.f32.partialorder %v939, 0.0
  %v948 = vand.u32 %v939, 2147483648
  %v949 = vsel %vm947, %v948, %v946
  %v950 = vrsqrt.pop %v940
  %v951 = vmul.f32 %v940, %v950
  %vm952 = vcmp.eq.f32.partialorder %v940, inf
  %v953 = vsel %vm952, %v940, %v951
  %vm954 = vcmp.eq.f32.partialorder %v940, 0.0
  %v955 = vand.u32 %v940, 2147483648
  %v956 = vsel %vm954, %v955, %v953
  %v957 = vrsqrt.pop %v941
  %v958 = vmul.f32 %v941, %v957
  %vm959 = vcmp.eq.f32.partialorder %v941, inf
  %v960 = vsel %vm959, %v941, %v958
  %vm961 = vcmp.eq.f32.partialorder %v941, 0.0
  %v962 = vand.u32 %v941, 2147483648
  %v963 = vsel %vm961, %v962, %v960
  %v964 = vrsqrt.pop %v942
  %v965 = vmul.f32 %v942, %v964
  %vm966 = vcmp.eq.f32.partialorder %v942, inf
  %v967 = vsel %vm966, %v942, %v965
  %vm968 = vcmp.eq.f32.partialorder %v942, 0.0
  %v969 = vand.u32 %v942, 2147483648
  %v970 = vsel %vm968, %v969, %v967
  %v971 = vxor.u32 %v949, 2147483648
  %v972 = vxor.u32 %v956, 2147483648
  %v973 = vxor.u32 %v963, 2147483648
  %v974 = vxor.u32 %v970, 2147483648
  %v975 = vmul.f32 %v971, 1.442695
  %v976 = vpow.pop %v975
  %v977 = vmul.f32 %v972, 1.442695
  %v978 = vpow.pop %v977
  %v979 = vmul.f32 %v973, 1.442695
  %v980 = vpow.pop %v979
  %v981 = vmul.f32 %v974, 1.442695
  %v982 = vpow.pop %v981
  %v983 = vadd.f32 %v976, 1.0
  %v984 = vadd.f32 %v978, 1.0
  %v985 = vadd.f32 %v980, 1.0
  %v986 = vadd.f32 %v982, 1.0
  %v987 = vrcp.pop %v983
  %v988 = vmul.f32 1.0, %v987
  %v989 = vrcp.pop %v984
  %v990 = vmul.f32 1.0, %v989
  %v991 = vrcp.pop %v985
  %v992 = vmul.f32 1.0, %v991
  %v993 = vrcp.pop %v986
  %v994 = vmul.f32 1.0, %v993
  %v995 = vmul.f32 %v873, %v988
  %v996 = vmul.f32 %v876, %v990
  %v997 = vmul.f32 %v881, %v992
  %v998 = vmul.f32 %v884, %v994
  %v999 = vmul.f32 %v889, %v988
  %v1000 = vmul.f32 %v892, %v990
  %v1001 = vmul.f32 %v897, %v992
  %v1002 = vmul.f32 %v900, %v994
  %v1003 = vmul.f32 %v905, %v988
  %v1004 = vmul.f32 %v908, %v990
  %v1005 = vmul.f32 %v913, %v992
  %v1006 = vmul.f32 %v916, %v994
  %v1007 = vmax.f32 %v796, 0.0
  %v1008 = vmax.f32 %v799, 0.0
  %v1009 = vmax.f32 %v804, 0.0
  %v1010 = vmax.f32 %v807, 0.0
  %v1011 = vld [vmem:[%s4 + $0x50] sm:$0x3]
  %v1012 = vpack.c.bf16 %v996, %v995
  %v1013 = vpack.c.bf16 %v998, %v997
  %v1014 = vpack.c.bf16 %v1000, %v999
  %v1015 = vpack.c.bf16 %v1002, %v1001
  %v1016 = vpack.c.bf16 %v1004, %v1003
  %v1017 = vpack.c.bf16 %v1006, %v1005
  %v1019 = vsel %vm563, %v1012, 0
  %v1022 = vsel %vm563, %v1013, 0
  %v1025 = vsel %vm563, %v1014, 0
  %v1028 = vsel %vm563, %v1015, 0
  %v1031 = vsel %vm563, %v1016, 0
  %v1034 = vsel %vm563, %v1017, 0
  %v1037 = vsel %vm582, %v1011, 0
  %1039 = vmatprep.subr.bf16.mxu0 0
  %1040 = vmatpush1.bf16.msra.mxu0 %v1037
  %1041 = vmatprep.subr.bf16.mxu0 0
  %1042 = vmatpush1.bf16.msra.mxu0 0
  %1043 = vmatprep.subr.bf16.mxu0 0
  %1044 = vmatpush1.bf16.msra.mxu0 0
  %1045 = vmatprep.subr.bf16.mxu0 0
  %1046 = vmatpush1.bf16.msra.mxu0 0
  %1047 = vmatprep.subr.bf16.mxu0 0
  %1048 = vmatpush1.bf16.msra.mxu0 0
  %1049 = vmatprep.subr.bf16.mxu0 0
  %1050 = vmatpush1.bf16.msra.mxu0 0
  %1051 = vmatprep.subr.bf16.mxu0 0
  %1052 = vmatpush1.bf16.msra.mxu0 0
  %1053 = vmatprep.subr.bf16.mxu0 0
  %1054 = vmatpush1.bf16.msra.mxu0 0
  %1055 = vmatprep.subr.bf16.mxu0 0
  %1056 = vmatpush1.bf16.msra.mxu0 0
  %1057 = vmatprep.subr.bf16.mxu0 0
  %1058 = vmatpush1.bf16.msra.mxu0 0
  %1059 = vmatprep.subr.bf16.mxu0 0
  %1060 = vmatpush1.bf16.msra.mxu0 0
  %1061 = vmatprep.subr.bf16.mxu0 0
  %1062 = vmatpush1.bf16.msra.mxu0 0
  %1063 = vmatprep.subr.bf16.mxu0 0
  %1064 = vmatpush1.bf16.msra.mxu0 0
  %1065 = vmatprep.subr.bf16.mxu0 0
  %1066 = vmatpush1.bf16.msra.mxu0 0
  %1067 = vmatprep.subr.bf16.mxu0 0
  %1068 = vmatpush1.bf16.msra.mxu0 0
  %1069 = vmatprep.subr.bf16.mxu0 0
  %1070 = vmatpush1.bf16.msra.mxu0 0
  %1071 = vmatprep.mubr.bf16.mxu0 0
  %1072 = vmatmul.mubr.bf16.gmra.mrb[0].mxu0 %v1019
  %v1073 = vpop.f32.mrb[0].mxu0
  %v1074 = vadd.f32 0.0, %v1073
  %v1075 = vpop.f32.mrb[0].mxu0
  %v1076 = vpop.f32.mrb[0].mxu0
  %v1077 = vadd.f32 0.0, %v1076
  %v1078 = vpop.f32.mrb[0].mxu0
  %1079 = vmatprep.mubr.bf16.mxu0 0
  %1080 = vmatmul.mubr.bf16.gmra.mrb[0].mxu0 %v1022
  %v1081 = vpop.f32.mrb[0].mxu0
  %v1082 = vadd.f32 0.0, %v1081
  %v1083 = vpop.f32.mrb[0].mxu0
  %v1084 = vpop.f32.mrb[0].mxu0
  %v1085 = vadd.f32 0.0, %v1084
  %v1086 = vpop.f32.mrb[0].mxu0
  %1087 = vmatprep.mubr.bf16.mxu0 0
  %1088 = vmatmul.mubr.bf16.gmra.mrb[0].mxu0 %v1025
  %v1089 = vpop.f32.mrb[0].mxu0
  %v1090 = vadd.f32 0.0, %v1089
  %v1091 = vpop.f32.mrb[0].mxu0
  %v1092 = vpop.f32.mrb[0].mxu0
  %v1093 = vadd.f32 0.0, %v1092
  %v1094 = vpop.f32.mrb[0].mxu0
  %1095 = vmatprep.mubr.bf16.mxu0 0
  %1096 = vmatmul.mubr.bf16.gmra.mrb[0].mxu0 %v1028
  %v1097 = vpop.f32.mrb[0].mxu0
  %v1098 = vadd.f32 0.0, %v1097
  %v1099 = vpop.f32.mrb[0].mxu0
  %v1100 = vpop.f32.mrb[0].mxu0
  %v1101 = vadd.f32 0.0, %v1100
  %v1102 = vpop.f32.mrb[0].mxu0
  %1103 = vmatprep.mubr.bf16.mxu0 0
  %1104 = vmatmul.mubr.bf16.gmra.mrb[0].mxu0 %v1031
  %v1105 = vpop.f32.mrb[0].mxu0
  %v1106 = vadd.f32 0.0, %v1105
  %v1107 = vpop.f32.mrb[0].mxu0
  %v1108 = vpop.f32.mrb[0].mxu0
  %v1109 = vadd.f32 0.0, %v1108
  %v1110 = vpop.f32.mrb[0].mxu0
  %1111 = vmatprep.mubr.bf16.mxu0 0
  %1112 = vmatmul.mubr.bf16.gmra.mrb[0].mxu0 %v1034
  %v1113 = vpop.f32.mrb[0].mxu0
  %v1114 = vadd.f32 0.0, %v1113
  %v1115 = vpop.f32.mrb[0].mxu0
  %v1116 = vpop.f32.mrb[0].mxu0
  %v1117 = vadd.f32 0.0, %v1116
  %v1118 = vpop.f32.mrb[0].mxu0
  %1119 = vdwg.mxu0
  %v1120 = vmul.f32 %v1074, %v1074
  %v1121 = vmul.f32 %v1077, %v1077
  %v1122 = vmul.f32 %v1082, %v1082
  %v1123 = vmul.f32 %v1085, %v1085
  %v1124 = vmul.f32 %v1090, %v1090
  %v1125 = vmul.f32 %v1093, %v1093
  %v1126 = vmul.f32 %v1098, %v1098
  %v1127 = vmul.f32 %v1101, %v1101
  %v1128 = vadd.f32 %v1120, %v1124
  %v1129 = vadd.f32 %v1121, %v1125
  %v1130 = vadd.f32 %v1122, %v1126
  %v1131 = vadd.f32 %v1123, %v1127
  %v1132 = vmul.f32 %v1106, %v1106
  %v1133 = vmul.f32 %v1109, %v1109
  %v1134 = vmul.f32 %v1114, %v1114
  %v1135 = vmul.f32 %v1117, %v1117
  %v1136 = vadd.f32 %v1128, %v1132
  %v1137 = vadd.f32 %v1129, %v1133
  %v1138 = vadd.f32 %v1130, %v1134
  %v1139 = vadd.f32 %v1131, %v1135
  %v1140 = vmax.f32 %v1136, 1e-08
  %v1141 = vmax.f32 %v1137, 1e-08
  %v1142 = vmax.f32 %v1138, 1e-08
  %v1143 = vmax.f32 %v1139, 1e-08
  %v1144 = vrsqrt.pop %v1140
  %v1145 = vmul.f32 %v1140, %v1144
  %vm1146 = vcmp.eq.f32.partialorder %v1140, inf
  %v1147 = vsel %vm1146, %v1140, %v1145
  %vm1148 = vcmp.eq.f32.partialorder %v1140, 0.0
  %v1149 = vand.u32 %v1140, 2147483648
  %v1150 = vsel %vm1148, %v1149, %v1147
  %v1151 = vrsqrt.pop %v1141
  %v1152 = vmul.f32 %v1141, %v1151
  %vm1153 = vcmp.eq.f32.partialorder %v1141, inf
  %v1154 = vsel %vm1153, %v1141, %v1152
  %vm1155 = vcmp.eq.f32.partialorder %v1141, 0.0
  %v1156 = vand.u32 %v1141, 2147483648
  %v1157 = vsel %vm1155, %v1156, %v1154
  %v1158 = vrsqrt.pop %v1142
  %v1159 = vmul.f32 %v1142, %v1158
  %vm1160 = vcmp.eq.f32.partialorder %v1142, inf
  %v1161 = vsel %vm1160, %v1142, %v1159
  %vm1162 = vcmp.eq.f32.partialorder %v1142, 0.0
  %v1163 = vand.u32 %v1142, 2147483648
  %v1164 = vsel %vm1162, %v1163, %v1161
  %v1165 = vrsqrt.pop %v1143
  %v1166 = vmul.f32 %v1143, %v1165
  %vm1167 = vcmp.eq.f32.partialorder %v1143, inf
  %v1168 = vsel %vm1167, %v1143, %v1166
  %vm1169 = vcmp.eq.f32.partialorder %v1143, 0.0
  %v1170 = vand.u32 %v1143, 2147483648
  %v1171 = vsel %vm1169, %v1170, %v1168
  %v1172 = vpack.c.bf16 %v1008, %v1007
  %v1173 = vpack.c.bf16 %v1010, %v1009
  %v1174 = vpack.c.bf16 %v1157, %v1150
  %v1175 = vpack.c.bf16 %v1171, %v1164
  %1178 = vrot.lane.b32.xlu0 %v1174, 16
  %v1179 = vpop.permute.xlu0 %1178
  %1180 = vrot.lane.b32.xlu0 %v1175, 16
  %v1181 = vpop.permute.xlu0 %1180
  %v1184 = vsel %vm729, %v1172, %v1179
  %v1187 = vsel %vm729, %v1173, %v1181
  %v1188 = vld [vmem:[%s4 + $0x58] sm:$0xf]
  %v1189 = vld [vmem:[%s4 + $0x5c] sm:$0xf]
  %v1190 = vld [vmem:[%s4 + $0x60] sm:$0x3]
  %v1191 = vld [vmem:[%s5 + $0x2] sm:$0x1]
  %v1192 = vlaneseq
  %v1193 = vshrl.u32 %v1192, 7
  %v1194 = vsub.s32 0, %v1193
  %v1195 = vrot.slane %v1191, %v1194
  %v1199 = vunpack.c.l.b16 %v1188
  %v1200 = vunpack.c.l.b16 %v1189
  %v1201 = vunpack.c.l.b16 %v1190
  %v1202 = vpack.c.b16 %v1200, %v1199
  %v1203 = vpack.c.b16 %v1201, %v1201
  %v1205 = vsel %vm753, %v1184, 0
  %v1207 = vsel %vm753, %v1187, 0
  %v1210 = vsel %vm582, %v1203, 0
  %1212 = vmatprep.subr.bf16.mxu0 0
  %1213 = vmatpush1.bf16.msra.mxu0 %v1202
  %1214 = vmatprep.subr.bf16.mxu0 0
  %1215 = vmatpush1.bf16.msra.mxu0 %v1210
  %1216 = vmatprep.subr.bf16.mxu0 0
  %1217 = vmatpush1.bf16.msra.mxu0 0
  %1218 = vmatprep.subr.bf16.mxu0 0
  %1219 = vmatpush1.bf16.msra.mxu0 0
  %1220 = vmatprep.subr.bf16.mxu0 0
  %1221 = vmatpush1.bf16.msra.mxu0 0
  %1222 = vmatprep.subr.bf16.mxu0 0
  %1223 = vmatpush1.bf16.msra.mxu0 0
  %1224 = vmatprep.subr.bf16.mxu0 0
  %1225 = vmatpush1.bf16.msra.mxu0 0
  %1226 = vmatprep.subr.bf16.mxu0 0
  %1227 = vmatpush1.bf16.msra.mxu0 0
  %1228 = vmatprep.subr.bf16.mxu0 0
  %1229 = vmatpush1.bf16.msra.mxu0 0
  %1230 = vmatprep.subr.bf16.mxu0 0
  %1231 = vmatpush1.bf16.msra.mxu0 0
  %1232 = vmatprep.subr.bf16.mxu0 0
  %1233 = vmatpush1.bf16.msra.mxu0 0
  %1234 = vmatprep.subr.bf16.mxu0 0
  %1235 = vmatpush1.bf16.msra.mxu0 0
  %1236 = vmatprep.subr.bf16.mxu0 0
  %1237 = vmatpush1.bf16.msra.mxu0 0
  %1238 = vmatprep.subr.bf16.mxu0 0
  %1239 = vmatpush1.bf16.msra.mxu0 0
  %1240 = vmatprep.subr.bf16.mxu0 0
  %1241 = vmatpush1.bf16.msra.mxu0 0
  %1242 = vmatprep.subr.bf16.mxu0 0
  %1243 = vmatpush1.bf16.msra.mxu0 0
  %1244 = vmatprep.mubr.bf16.mxu0 0
  %1245 = vmatmul.mubr.bf16.gmra.mrb[0].mxu0 %v1205
  %v1246 = vpop.f32.mrb[0].mxu0
  %v1247 = vadd.f32 %v1195, %v1246
  %v1248 = vpop.f32.mrb[0].mxu0
  %v1249 = vpop.f32.mrb[0].mxu0
  %v1250 = vadd.f32 %v1195, %v1249
  %v1251 = vpop.f32.mrb[0].mxu0
  %1252 = vmatprep.mubr.bf16.mxu0 0
  %1253 = vmatmul.mubr.bf16.gmra.mrb[0].mxu0 %v1207
  %v1254 = vpop.f32.mrb[0].mxu0
  %v1255 = vadd.f32 %v1195, %v1254
  %v1256 = vpop.f32.mrb[0].mxu0
  %v1257 = vpop.f32.mrb[0].mxu0
  %v1258 = vadd.f32 %v1195, %v1257
  %v1259 = vpop.f32.mrb[0].mxu0
  %1260 = vdwg.mxu0
  %v1261 = vld [vmem:[%s4 + $0x68] sm:$0x3]
  %v1262 = vpack.c.bf16 %v1077, %v1074
  %v1263 = vpack.c.bf16 %v1085, %v1082
  %v1264 = vpack.c.bf16 %v1093, %v1090
  %v1265 = vpack.c.bf16 %v1101, %v1098
  %v1266 = vpack.c.bf16 %v1109, %v1106
  %v1267 = vpack.c.bf16 %v1117, %v1114
  %v1269 = vsel %vm563, %v1262, 0
  %v1272 = vsel %vm563, %v1263, 0
  %v1275 = vsel %vm563, %v1264, 0
  %v1278 = vsel %vm563, %v1265, 0
  %v1281 = vsel %vm563, %v1266, 0
  %v1284 = vsel %vm563, %v1267, 0
  %v1287 = vsel %vm582, %v1261, 0
  %1289 = vmatprep.subr.bf16.mxu0 0
  %1290 = vmatpush1.bf16.msra.mxu0 %v1287
  %1291 = vmatprep.subr.bf16.mxu0 0
  %1292 = vmatpush1.bf16.msra.mxu0 0
  %1293 = vmatprep.subr.bf16.mxu0 0
  %1294 = vmatpush1.bf16.msra.mxu0 0
  %1295 = vmatprep.subr.bf16.mxu0 0
  %1296 = vmatpush1.bf16.msra.mxu0 0
  %1297 = vmatprep.subr.bf16.mxu0 0
  %1298 = vmatpush1.bf16.msra.mxu0 0
  %1299 = vmatprep.subr.bf16.mxu0 0
  %1300 = vmatpush1.bf16.msra.mxu0 0
  %1301 = vmatprep.subr.bf16.mxu0 0
  %1302 = vmatpush1.bf16.msra.mxu0 0
  %1303 = vmatprep.subr.bf16.mxu0 0
  %1304 = vmatpush1.bf16.msra.mxu0 0
  %1305 = vmatprep.subr.bf16.mxu0 0
  %1306 = vmatpush1.bf16.msra.mxu0 0
  %1307 = vmatprep.subr.bf16.mxu0 0
  %1308 = vmatpush1.bf16.msra.mxu0 0
  %1309 = vmatprep.subr.bf16.mxu0 0
  %1310 = vmatpush1.bf16.msra.mxu0 0
  %1311 = vmatprep.subr.bf16.mxu0 0
  %1312 = vmatpush1.bf16.msra.mxu0 0
  %1313 = vmatprep.subr.bf16.mxu0 0
  %1314 = vmatpush1.bf16.msra.mxu0 0
  %1315 = vmatprep.subr.bf16.mxu0 0
  %1316 = vmatpush1.bf16.msra.mxu0 0
  %1317 = vmatprep.subr.bf16.mxu0 0
  %1318 = vmatpush1.bf16.msra.mxu0 0
  %1319 = vmatprep.subr.bf16.mxu0 0
  %1320 = vmatpush1.bf16.msra.mxu0 0
  %1321 = vmatprep.mubr.bf16.mxu0 0
  %1322 = vmatmul.mubr.bf16.gmra.mrb[0].mxu0 %v1269
  %v1323 = vpop.f32.mrb[0].mxu0
  %v1324 = vadd.f32 0.0, %v1323
  %v1325 = vpop.f32.mrb[0].mxu0
  %v1326 = vpop.f32.mrb[0].mxu0
  %v1327 = vadd.f32 0.0, %v1326
  %v1328 = vpop.f32.mrb[0].mxu0
  %1329 = vmatprep.mubr.bf16.mxu0 0
  %1330 = vmatmul.mubr.bf16.gmra.mrb[0].mxu0 %v1272
  %v1331 = vpop.f32.mrb[0].mxu0
  %v1332 = vadd.f32 0.0, %v1331
  %v1333 = vpop.f32.mrb[0].mxu0
  %v1334 = vpop.f32.mrb[0].mxu0
  %v1335 = vadd.f32 0.0, %v1334
  %v1336 = vpop.f32.mrb[0].mxu0
  %1337 = vmatprep.mubr.bf16.mxu0 0
  %1338 = vmatmul.mubr.bf16.gmra.mrb[0].mxu0 %v1275
  %v1339 = vpop.f32.mrb[0].mxu0
  %v1340 = vadd.f32 0.0, %v1339
  %v1341 = vpop.f32.mrb[0].mxu0
  %v1342 = vpop.f32.mrb[0].mxu0
  %v1343 = vadd.f32 0.0, %v1342
  %v1344 = vpop.f32.mrb[0].mxu0
  %1345 = vmatprep.mubr.bf16.mxu0 0
  %1346 = vmatmul.mubr.bf16.gmra.mrb[0].mxu0 %v1278
  %v1347 = vpop.f32.mrb[0].mxu0
  %v1348 = vadd.f32 0.0, %v1347
  %v1349 = vpop.f32.mrb[0].mxu0
  %v1350 = vpop.f32.mrb[0].mxu0
  %v1351 = vadd.f32 0.0, %v1350
  %v1352 = vpop.f32.mrb[0].mxu0
  %1353 = vmatprep.mubr.bf16.mxu0 0
  %1354 = vmatmul.mubr.bf16.gmra.mrb[0].mxu0 %v1281
  %v1355 = vpop.f32.mrb[0].mxu0
  %v1356 = vadd.f32 0.0, %v1355
  %v1357 = vpop.f32.mrb[0].mxu0
  %v1358 = vpop.f32.mrb[0].mxu0
  %v1359 = vadd.f32 0.0, %v1358
  %v1360 = vpop.f32.mrb[0].mxu0
  %1361 = vmatprep.mubr.bf16.mxu0 0
  %1362 = vmatmul.mubr.bf16.gmra.mrb[0].mxu0 %v1284
  %v1363 = vpop.f32.mrb[0].mxu0
  %v1364 = vadd.f32 0.0, %v1363
  %v1365 = vpop.f32.mrb[0].mxu0
  %v1366 = vpop.f32.mrb[0].mxu0
  %v1367 = vadd.f32 0.0, %v1366
  %v1368 = vpop.f32.mrb[0].mxu0
  %1369 = vdwg.mxu0
  %1374 = vrot.lane.b32.xlu0 %v1324, 16
  %v1375 = vpop.permute.xlu0 %1374
  %1376 = vrot.lane.b32.xlu0 %v1327, 16
  %v1377 = vpop.permute.xlu0 %1376
  %1378 = vrot.lane.b32.xlu0 %v1332, 16
  %v1379 = vpop.permute.xlu0 %1378
  %1380 = vrot.lane.b32.xlu0 %v1335, 16
  %v1381 = vpop.permute.xlu0 %1380
  %1390 = vrot.lane.b32.xlu0 %v1340, 20
  %v1391 = vpop.permute.xlu0 %1390
  %1392 = vrot.lane.b32.xlu0 %v1343, 20
  %v1393 = vpop.permute.xlu0 %1392
  %1394 = vrot.lane.b32.xlu0 %v1348, 20
  %v1395 = vpop.permute.xlu0 %1394
  %1396 = vrot.lane.b32.xlu0 %v1351, 20
  %v1397 = vpop.permute.xlu0 %1396
  %1406 = vrot.lane.b32.xlu0 %v1356, 24
  %v1407 = vpop.permute.xlu0 %1406
  %1408 = vrot.lane.b32.xlu0 %v1359, 24
  %v1409 = vpop.permute.xlu0 %1408
  %1410 = vrot.lane.b32.xlu0 %v1364, 24
  %v1411 = vpop.permute.xlu0 %1410
  %1412 = vrot.lane.b32.xlu0 %v1367, 24
  %v1413 = vpop.permute.xlu0 %1412
  %v1418 = vsel %vm729, %v1247, %v1375
  %v1419 = vsel %vm729, %v1250, %v1377
  %v1420 = vsel %vm729, %v1255, %v1379
  %v1421 = vsel %vm729, %v1258, %v1381
  %v1422 = vsel %vm753, %v1418, %v1391
  %v1423 = vsel %vm753, %v1419, %v1393
  %v1424 = vsel %vm753, %v1420, %v1395
  %v1425 = vsel %vm753, %v1421, %v1397
  %vm1426 = vcmask 195584
  %v1427 = vsel %vm1426, %v1422, %v1407
  %v1428 = vsel %vm1426, %v1423, %v1409
  %v1429 = vsel %vm1426, %v1424, %v1411
  %v1430 = vsel %vm1426, %v1425, %v1413
  %v1431 = vld [vmem:[%s2] sm:$0xff]
  %v1432 = vld [vmem:[%s2 + $0x8] sm:$0xff]
  %vm1433 = vcmask 261120
  %v1435 = vsel %vm1433, %v1431, 0
  %v1438 = vsel %vm1433, %v1432, 0
  %1440 = vmatprep.subr.mxu0 0.0
  %1441 = vmatpush1.msra.mxu0 %v1427
  %1442 = vmatprep.subr.mxu0 0.0
  %1443 = vmatpush1.msra.mxu0 %v1428
  %1444 = vmatprep.subr.mxu0 0.0
  %1445 = vmatpush1.msra.mxu0 %v1429
  %1446 = vmatprep.subr.mxu0 0.0
  %1447 = vmatpush1.msra.mxu0 %v1430
  %1448 = vmatprep.subr.mxu0 0.0
  %1449 = vmatpush1.msra.mxu0 0.0
  %1450 = vmatprep.subr.mxu0 0.0
  %1451 = vmatpush1.msra.mxu0 0.0
  %1452 = vmatprep.subr.mxu0 0.0
  %1453 = vmatpush1.msra.mxu0 0.0
  %1454 = vmatprep.subr.mxu0 0.0
  %1455 = vmatpush1.msra.mxu0 0.0
  %1456 = vmatprep.subr.mxu0 0.0
  %1457 = vmatpush1.msra.mxu0 0.0
  %1458 = vmatprep.subr.mxu0 0.0
  %1459 = vmatpush1.msra.mxu0 0.0
  %1460 = vmatprep.subr.mxu0 0.0
  %1461 = vmatpush1.msra.mxu0 0.0
  %1462 = vmatprep.subr.mxu0 0.0
  %1463 = vmatpush1.msra.mxu0 0.0
  %1464 = vmatprep.subr.mxu0 0.0
  %1465 = vmatpush1.msra.mxu0 0.0
  %1466 = vmatprep.subr.mxu0 0.0
  %1467 = vmatpush1.msra.mxu0 0.0
  %1468 = vmatprep.subr.mxu0 0.0
  %1469 = vmatpush1.msra.mxu0 0.0
  %1470 = vmatprep.subr.mxu0 0.0
  %1471 = vmatpush1.msra.mxu0 0.0
  %1472 = vmatprep.subr.mxu0 0.0
  %1473 = vmatpush1.msra.mxu0 0.0
  %1474 = vmatprep.subr.mxu0 0.0
  %1475 = vmatpush1.msra.mxu0 0.0
  %1476 = vmatprep.subr.mxu0 0.0
  %1477 = vmatpush1.msra.mxu0 0.0
  %1478 = vmatprep.subr.mxu0 0.0
  %1479 = vmatpush1.msra.mxu0 0.0
  %1480 = vmatprep.subr.mxu0 0.0
  %1481 = vmatpush1.msra.mxu0 0.0
  %1482 = vmatprep.subr.mxu0 0.0
  %1483 = vmatpush1.msra.mxu0 0.0
  %1484 = vmatprep.subr.mxu0 0.0
  %1485 = vmatpush1.msra.mxu0 0.0
  %1486 = vmatprep.subr.mxu0 0.0
  %1487 = vmatpush1.msra.mxu0 0.0
  %1488 = vmatprep.subr.mxu0 0.0
  %1489 = vmatpush1.msra.mxu0 0.0
  %1490 = vmatprep.subr.mxu0 0.0
  %1491 = vmatpush1.msra.mxu0 0.0
  %1492 = vmatprep.subr.mxu0 0.0
  %1493 = vmatpush1.msra.mxu0 0.0
  %1494 = vmatprep.subr.mxu0 0.0
  %1495 = vmatpush1.msra.mxu0 0.0
  %1496 = vmatprep.subr.mxu0 0.0
  %1497 = vmatpush1.msra.mxu0 0.0
  %1498 = vmatprep.subr.mxu0 0.0
  %1499 = vmatpush1.msra.mxu0 0.0
  %1500 = vmatprep.subr.mxu0 0.0
  %1501 = vmatpush1.msra.mxu0 0.0
  %1502 = vmatprep.subr.mxu0 0.0
  %1503 = vmatpush1.msra.mxu0 0.0
  %1504 = vmatprep.mubr.f32.mxu0 0.0
  %1505 = vmatmul.mubr.f32.gmra.mrb[0].mxu0 %v1435
  %v1506 = vpop.f32.mrb[0].mxu0
  %v1507 = vadd.f32 0.0, %v1506
  %v1508 = vpop.f32.mrb[0].mxu0
  %1509 = vmatprep.mubr.f32.mxu0 0.0
  %1510 = vmatmul.mubr.f32.gmra.mrb[0].mxu0 %v1438
  %v1511 = vpop.f32.mrb[0].mxu0
  %v1512 = vadd.f32 0.0, %v1511
  %v1513 = vpop.f32.mrb[0].mxu0
  %1514 = vdwg.mxu0
  %v1515 = vld [vmem:[%s3] sm:$0xff]
  %v1516 = vld [vmem:[%s3 + $0x8] sm:$0xff]
  %1518 = vset.pattern.permute.xlu0 0
  %1519 = vperm.xlu0 %1518, %v1515
  %v1520 = vpop.permute.xlu0 %1519
  %1523 = vset.pattern.permute.xlu0 0
  %1524 = vperm.xlu0 %1523, %v1516
  %v1525 = vpop.permute.xlu0 %1524
  %v1527 = vmul.f32 %v1507, %v1520
  %v1528 = vmul.f32 %v1512, %v1525
  %1531 = vrot.lane.b32.xlu0 %v1527, 124
  %v1532 = vpop.permute.xlu0 %1531
  %1533 = vrot.lane.b32.xlu0 %v1528, 124
  %v1534 = vpop.permute.xlu0 %1533
  %1535 = vrot.lane.b32.xlu0 %v1527, 120
  %v1536 = vpop.permute.xlu0 %1535
  %1537 = vrot.lane.b32.xlu0 %v1528, 120
  %v1538 = vpop.permute.xlu0 %1537
  %v1539 = vld [vmem:[%s1] sm:$0xff]
  %v1540 = vld [vmem:[%s1 + $0x8] sm:$0xff]
  %v1541 = vld [vmem:[%s1 + $0x10] sm:$0xff]
  %v1542 = vld [vmem:[%s1 + $0x18] sm:$0xff]
  %v1543 = vld [vmem:[%s1 + $0x20] sm:$0xff]
  %v1544 = vld [vmem:[%s1 + $0x28] sm:$0xff]
  %v1545 = vld [vmem:[%s1 + $0x30] sm:$0xff]
  %v1546 = vld [vmem:[%s1 + $0x38] sm:$0xff]
  %v1547 = vadd.f32 %v1539, %v1527
  %v1548 = vadd.f32 %v1540, %v1528
  %1549 = vrot.lane.b32.xlu0 %v1527, 112
  %v1550 = vpop.permute.xlu0 %1549
  %1551 = vrot.lane.b32.xlu0 %v1528, 112
  %v1552 = vpop.permute.xlu0 %1551
  %1553 = vrot.lane.b32.xlu0 %v1532, 112
  %v1554 = vpop.permute.xlu0 %1553
  %1555 = vrot.lane.b32.xlu0 %v1534, 112
  %v1556 = vpop.permute.xlu0 %1555
  %1557 = vrot.lane.b32.xlu0 %v1536, 112
  %v1558 = vpop.permute.xlu0 %1557
  %1559 = vrot.lane.b32.xlu0 %v1538, 112
  %v1560 = vpop.permute.xlu0 %1559
  %v1567 = vadd.f32 %v1541, %v1550
  %v1568 = vadd.f32 %v1542, %v1552
  %v1569 = vadd.f32 %v1543, %v1554
  %v1570 = vadd.f32 %v1544, %v1556
  %v1571 = vadd.f32 %v1545, %v1558
  %v1572 = vadd.f32 %v1546, %v1560
  %v1573 = vsel %vm729, %v1547, 0.0
  %1574 = vadd.xlane.f32.xlu0 %v1573
  %v1575 = vpop.xlane.xlu0 %1574
  %v1576 = vsel %vm729, %v1548, 0.0
  %1577 = vadd.xlane.f32.xlu0 %v1576
  %v1578 = vpop.xlane.xlu0 %1577
  %v1579 = vrcp.pop 16.0
  %v1580 = vmul.f32 %v1575, %v1579
  %v1581 = vmul.f32 %v1578, %v1579
  %v1582 = vsub.f32 %v1547, %v1580
  %v1583 = vsub.f32 %v1548, %v1581
  %v1584 = vmul.f32 %v1582, %v1582
  %v1585 = vmul.f32 %v1583, %v1583
  %v1586 = vsel %vm729, %v1584, 0.0
  %1587 = vadd.xlane.f32.xlu0 %v1586
  %v1588 = vpop.xlane.xlu0 %1587
  %v1589 = vsel %vm729, %v1585, 0.0
  %1590 = vadd.xlane.f32.xlu0 %v1589
  %v1591 = vpop.xlane.xlu0 %1590
  %v1592 = vmul.f32 %v1588, %v1579
  %v1593 = vmul.f32 %v1591, %v1579
  %v1594 = vadd.f32 %v1592, 1e-05
  %v1595 = vadd.f32 %v1593, 1e-05
  %v1596 = vrsqrt.pop %v1594
  %v1597 = vrsqrt.pop %v1595
  %v1598 = vmul.f32 %v1582, %v1596
  %v1599 = vmul.f32 %v1583, %v1597
  %v1600 = vld [vmem:[%s5 + $0x5] sm:$0x1]
  %v1601 = vlaneseq
  %v1602 = vshrl.u32 %v1601, 7
  %v1603 = vsub.s32 0, %v1602
  %v1604 = vrot.slane %v1600, %v1603
  %v1605 = vmul.f32 %v1598, %v1604
  %v1606 = vmul.f32 %v1599, %v1604
  %v1607 = vld [vmem:[%s5 + $0x6] sm:$0x1]
  %v1608 = vlaneseq
  %v1609 = vshrl.u32 %v1608, 7
  %v1610 = vsub.s32 0, %v1609
  %v1611 = vrot.slane %v1607, %v1610
  %v1612 = vadd.f32 %v1605, %v1611
  %v1613 = vadd.f32 %v1606, %v1611
  %v1614 = vmul.f32 %v1567, %v1567
  %v1615 = vmul.f32 %v1568, %v1568
  %v1616 = vmul.f32 %v1569, %v1569
  %v1617 = vmul.f32 %v1570, %v1570
  %v1618 = vadd.f32 %v1614, %v1616
  %v1619 = vadd.f32 %v1615, %v1617
  %v1620 = vmul.f32 %v1571, %v1571
  %v1621 = vmul.f32 %v1572, %v1572
  %v1622 = vadd.f32 %v1618, %v1620
  %v1623 = vadd.f32 %v1619, %v1621
  %v1624 = vmax.f32 %v1622, 1e-08
  %v1625 = vmax.f32 %v1623, 1e-08
  %v1626 = vsel %vm563, %v1624, 0.0
  %1627 = vadd.xlane.f32.xlu0 %v1626
  %v1628 = vpop.xlane.xlu0 %1627
  %v1629 = vsel %vm563, %v1625, 0.0
  %1630 = vadd.xlane.f32.xlu0 %v1629
  %v1631 = vpop.xlane.xlu0 %1630
  %v1632 = vrcp.pop 4.0
  %v1633 = vmul.f32 %v1628, %v1632
  %v1634 = vmul.f32 %v1631, %v1632
  %v1635 = vrsqrt.pop %v1633
  %v1636 = vrsqrt.pop %v1634
  %v1637 = vmul.f32 %v1567, %v1635
  %v1638 = vmul.f32 %v1568, %v1636
  %v1639 = vmul.f32 %v1569, %v1635
  %v1640 = vmul.f32 %v1570, %v1636
  %v1641 = vmul.f32 %v1571, %v1635
  %v1642 = vmul.f32 %v1572, %v1636
  %v1643 = vld [vmem:[%s4 + $0x70] sm:$0x3]
  %v1644 = vpack.c.bf16 %v1638, %v1637
  %v1645 = vpack.c.bf16 %v1640, %v1639
  %v1646 = vpack.c.bf16 %v1642, %v1641
  %v1648 = vsel %vm563, %v1644, 0
  %v1651 = vsel %vm563, %v1645, 0
  %v1654 = vsel %vm563, %v1646, 0
  %v1657 = vsel %vm582, %v1643, 0
  %1659 = vmatprep.subr.bf16.mxu0 0
  %1660 = vmatpush1.bf16.msra.mxu0 %v1657
  %1661 = vmatprep.subr.bf16.mxu0 0
  %1662 = vmatpush1.bf16.msra.mxu0 0
  %1663 = vmatprep.subr.bf16.mxu0 0
  %1664 = vmatpush1.bf16.msra.mxu0 0
  %1665 = vmatprep.subr.bf16.mxu0 0
  %1666 = vmatpush1.bf16.msra.mxu0 0
  %1667 = vmatprep.subr.bf16.mxu0 0
  %1668 = vmatpush1.bf16.msra.mxu0 0
  %1669 = vmatprep.subr.bf16.mxu0 0
  %1670 = vmatpush1.bf16.msra.mxu0 0
  %1671 = vmatprep.subr.bf16.mxu0 0
  %1672 = vmatpush1.bf16.msra.mxu0 0
  %1673 = vmatprep.subr.bf16.mxu0 0
  %1674 = vmatpush1.bf16.msra.mxu0 0
  %1675 = vmatprep.subr.bf16.mxu0 0
  %1676 = vmatpush1.bf16.msra.mxu0 0
  %1677 = vmatprep.subr.bf16.mxu0 0
  %1678 = vmatpush1.bf16.msra.mxu0 0
  %1679 = vmatprep.subr.bf16.mxu0 0
  %1680 = vmatpush1.bf16.msra.mxu0 0
  %1681 = vmatprep.subr.bf16.mxu0 0
  %1682 = vmatpush1.bf16.msra.mxu0 0
  %1683 = vmatprep.subr.bf16.mxu0 0
  %1684 = vmatpush1.bf16.msra.mxu0 0
  %1685 = vmatprep.subr.bf16.mxu0 0
  %1686 = vmatpush1.bf16.msra.mxu0 0
  %1687 = vmatprep.subr.bf16.mxu0 0
  %1688 = vmatpush1.bf16.msra.mxu0 0
  %1689 = vmatprep.subr.bf16.mxu0 0
  %1690 = vmatpush1.bf16.msra.mxu0 0
  %1691 = vmatprep.mubr.bf16.mxu0 0
  %1692 = vmatmul.mubr.bf16.gmra.mrb[0].mxu0 %v1648
  %v1693 = vpop.f32.mrb[0].mxu0
  %v1694 = vadd.f32 0.0, %v1693
  %v1695 = vpop.f32.mrb[0].mxu0
  %v1696 = vpop.f32.mrb[0].mxu0
  %v1697 = vadd.f32 0.0, %v1696
  %v1698 = vpop.f32.mrb[0].mxu0
  %1699 = vmatprep.mubr.bf16.mxu0 0
  %1700 = vmatmul.mubr.bf16.gmra.mrb[0].mxu0 %v1651
  %v1701 = vpop.f32.mrb[0].mxu0
  %v1702 = vadd.f32 0.0, %v1701
  %v1703 = vpop.f32.mrb[0].mxu0
  %v1704 = vpop.f32.mrb[0].mxu0
  %v1705 = vadd.f32 0.0, %v1704
  %v1706 = vpop.f32.mrb[0].mxu0
  %1707 = vmatprep.mubr.bf16.mxu0 0
  %1708 = vmatmul.mubr.bf16.gmra.mrb[0].mxu0 %v1654
  %v1709 = vpop.f32.mrb[0].mxu0
  %v1710 = vadd.f32 0.0, %v1709
  %v1711 = vpop.f32.mrb[0].mxu0
  %v1712 = vpop.f32.mrb[0].mxu0
  %v1713 = vadd.f32 0.0, %v1712
  %v1714 = vpop.f32.mrb[0].mxu0
  %1715 = vdwg.mxu0
  %v1716 = vmul.f32 %v1694, %v1694
  %v1717 = vmul.f32 %v1697, %v1697
  %v1718 = vmul.f32 %v1702, %v1702
  %v1719 = vmul.f32 %v1705, %v1705
  %v1720 = vadd.f32 %v1716, %v1718
  %v1721 = vadd.f32 %v1717, %v1719
  %v1722 = vmul.f32 %v1710, %v1710
  %v1723 = vmul.f32 %v1713, %v1713
  %v1724 = vadd.f32 %v1720, %v1722
  %v1725 = vadd.f32 %v1721, %v1723
  %v1726 = vmax.f32 %v1724, 1e-08
  %v1727 = vmax.f32 %v1725, 1e-08
  %v1728 = vrsqrt.pop %v1726
  %v1729 = vmul.f32 %v1726, %v1728
  %vm1730 = vcmp.eq.f32.partialorder %v1726, inf
  %v1731 = vsel %vm1730, %v1726, %v1729
  %vm1732 = vcmp.eq.f32.partialorder %v1726, 0.0
  %v1733 = vand.u32 %v1726, 2147483648
  %v1734 = vsel %vm1732, %v1733, %v1731
  %v1735 = vrsqrt.pop %v1727
  %v1736 = vmul.f32 %v1727, %v1735
  %vm1737 = vcmp.eq.f32.partialorder %v1727, inf
  %v1738 = vsel %vm1737, %v1727, %v1736
  %vm1739 = vcmp.eq.f32.partialorder %v1727, 0.0
  %v1740 = vand.u32 %v1727, 2147483648
  %v1741 = vsel %vm1739, %v1740, %v1738
  %v1742 = vpack.c.bf16 %v1613, %v1612
  %v1743 = vpack.c.bf16 %v1741, %v1734
  %1745 = vrot.lane.b32.xlu0 %v1743, 16
  %v1746 = vpop.permute.xlu0 %1745
  %v1749 = vsel %vm729, %v1742, %v1746
  %v1750 = vld [vmem:[%s4 + $0x78] sm:$0xf]
  %v1751 = vld [vmem:[%s4 + $0x7c] sm:$0xf]
  %v1752 = vld [vmem:[%s4 + $0x80] sm:$0xf]
  %v1753 = vld [vmem:[%s5 + $0x3] sm:$0x1]
  %v1754 = vlaneseq
  %v1755 = vshrl.u32 %v1754, 7
  %v1756 = vsub.s32 0, %v1755
  %v1757 = vrot.slane %v1753, %v1756
  %v1761 = vunpack.c.l.b16 %v1750
  %v1762 = vunpack.c.l.b16 %v1751
  %v1763 = vunpack.c.l.b16 %v1752
  %v1764 = vpack.c.b16 %v1762, %v1761
  %v1765 = vpack.c.b16 %v1763, %v1763
  %v1767 = vsel %vm1426, %v1749, 0
  %vm1769 = vcmask 1043456
  %v1771 = vsel %vm1769, %v1765, 0
  %1773 = vmatprep.subr.bf16.mxu0 0
  %1774 = vmatpush1.bf16.msra.mxu0 %v1764
  %1775 = vmatprep.subr.bf16.mxu0 0
  %1776 = vmatpush1.bf16.msra.mxu0 %v1771
  %1777 = vmatprep.subr.bf16.mxu0 0
  %1778 = vmatpush1.bf16.msra.mxu0 0
  %1779 = vmatprep.subr.bf16.mxu0 0
  %1780 = vmatpush1.bf16.msra.mxu0 0
  %1781 = vmatprep.subr.bf16.mxu0 0
  %1782 = vmatpush1.bf16.msra.mxu0 0
  %1783 = vmatprep.subr.bf16.mxu0 0
  %1784 = vmatpush1.bf16.msra.mxu0 0
  %1785 = vmatprep.subr.bf16.mxu0 0
  %1786 = vmatpush1.bf16.msra.mxu0 0
  %1787 = vmatprep.subr.bf16.mxu0 0
  %1788 = vmatpush1.bf16.msra.mxu0 0
  %1789 = vmatprep.subr.bf16.mxu0 0
  %1790 = vmatpush1.bf16.msra.mxu0 0
  %1791 = vmatprep.subr.bf16.mxu0 0
  %1792 = vmatpush1.bf16.msra.mxu0 0
  %1793 = vmatprep.subr.bf16.mxu0 0
  %1794 = vmatpush1.bf16.msra.mxu0 0
  %1795 = vmatprep.subr.bf16.mxu0 0
  %1796 = vmatpush1.bf16.msra.mxu0 0
  %1797 = vmatprep.subr.bf16.mxu0 0
  %1798 = vmatpush1.bf16.msra.mxu0 0
  %1799 = vmatprep.subr.bf16.mxu0 0
  %1800 = vmatpush1.bf16.msra.mxu0 0
  %1801 = vmatprep.subr.bf16.mxu0 0
  %1802 = vmatpush1.bf16.msra.mxu0 0
  %1803 = vmatprep.subr.bf16.mxu0 0
  %1804 = vmatpush1.bf16.msra.mxu0 0
  %1805 = vmatprep.mubr.bf16.mxu0 0
  %1806 = vmatmul.mubr.bf16.gmra.mrb[0].mxu0 %v1767
  %v1807 = vpop.f32.mrb[0].mxu0
  %v1808 = vadd.f32 %v1757, %v1807
  %v1809 = vpop.f32.mrb[0].mxu0
  %v1810 = vpop.f32.mrb[0].mxu0
  %v1811 = vadd.f32 %v1757, %v1810
  %v1812 = vpop.f32.mrb[0].mxu0
  %1813 = vdwg.mxu0
  %v1814 = vld [vmem:[%s4 + $0x88] sm:$0xf]
  %v1815 = vpack.c.bf16 %v1697, %v1694
  %v1816 = vpack.c.bf16 %v1705, %v1702
  %v1817 = vpack.c.bf16 %v1713, %v1710
  %vm1818 = vcmask 64512
  %v1820 = vsel %vm1818, %v1815, 0
  %v1823 = vsel %vm1818, %v1816, 0
  %v1826 = vsel %vm1818, %v1817, 0
  %v1829 = vsel %vm1769, %v1814, 0
  %1831 = vmatprep.subr.bf16.mxu0 0
  %1832 = vmatpush1.bf16.msra.mxu0 %v1829
  %1833 = vmatprep.subr.bf16.mxu0 0
  %1834 = vmatpush1.bf16.msra.mxu0 0
  %1835 = vmatprep.subr.bf16.mxu0 0
  %1836 = vmatpush1.bf16.msra.mxu0 0
  %1837 = vmatprep.subr.bf16.mxu0 0
  %1838 = vmatpush1.bf16.msra.mxu0 0
  %1839 = vmatprep.subr.bf16.mxu0 0
  %1840 = vmatpush1.bf16.msra.mxu0 0
  %1841 = vmatprep.subr.bf16.mxu0 0
  %1842 = vmatpush1.bf16.msra.mxu0 0
  %1843 = vmatprep.subr.bf16.mxu0 0
  %1844 = vmatpush1.bf16.msra.mxu0 0
  %1845 = vmatprep.subr.bf16.mxu0 0
  %1846 = vmatpush1.bf16.msra.mxu0 0
  %1847 = vmatprep.subr.bf16.mxu0 0
  %1848 = vmatpush1.bf16.msra.mxu0 0
  %1849 = vmatprep.subr.bf16.mxu0 0
  %1850 = vmatpush1.bf16.msra.mxu0 0
  %1851 = vmatprep.subr.bf16.mxu0 0
  %1852 = vmatpush1.bf16.msra.mxu0 0
  %1853 = vmatprep.subr.bf16.mxu0 0
  %1854 = vmatpush1.bf16.msra.mxu0 0
  %1855 = vmatprep.subr.bf16.mxu0 0
  %1856 = vmatpush1.bf16.msra.mxu0 0
  %1857 = vmatprep.subr.bf16.mxu0 0
  %1858 = vmatpush1.bf16.msra.mxu0 0
  %1859 = vmatprep.subr.bf16.mxu0 0
  %1860 = vmatpush1.bf16.msra.mxu0 0
  %1861 = vmatprep.subr.bf16.mxu0 0
  %1862 = vmatpush1.bf16.msra.mxu0 0
  %1863 = vmatprep.mubr.bf16.mxu0 0
  %1864 = vmatmul.mubr.bf16.gmra.mrb[0].mxu0 %v1820
  %v1865 = vpop.f32.mrb[0].mxu0
  %v1866 = vadd.f32 0.0, %v1865
  %v1867 = vpop.f32.mrb[0].mxu0
  %v1868 = vpop.f32.mrb[0].mxu0
  %v1869 = vadd.f32 0.0, %v1868
  %v1870 = vpop.f32.mrb[0].mxu0
  %1871 = vmatprep.mubr.bf16.mxu0 0
  %1872 = vmatmul.mubr.bf16.gmra.mrb[0].mxu0 %v1823
  %v1873 = vpop.f32.mrb[0].mxu0
  %v1874 = vadd.f32 0.0, %v1873
  %v1875 = vpop.f32.mrb[0].mxu0
  %v1876 = vpop.f32.mrb[0].mxu0
  %v1877 = vadd.f32 0.0, %v1876
  %v1878 = vpop.f32.mrb[0].mxu0
  %1879 = vmatprep.mubr.bf16.mxu0 0
  %1880 = vmatmul.mubr.bf16.gmra.mrb[0].mxu0 %v1826
  %v1881 = vpop.f32.mrb[0].mxu0
  %v1882 = vadd.f32 0.0, %v1881
  %v1883 = vpop.f32.mrb[0].mxu0
  %v1884 = vpop.f32.mrb[0].mxu0
  %v1885 = vadd.f32 0.0, %v1884
  %v1886 = vpop.f32.mrb[0].mxu0
  %1887 = vdwg.mxu0
  %v1888 = vmul.f32 %v1866, %v1866
  %v1889 = vmul.f32 %v1869, %v1869
  %v1890 = vmul.f32 %v1874, %v1874
  %v1891 = vmul.f32 %v1877, %v1877
  %v1892 = vadd.f32 %v1888, %v1890
  %v1893 = vadd.f32 %v1889, %v1891
  %v1894 = vmul.f32 %v1882, %v1882
  %v1895 = vmul.f32 %v1885, %v1885
  %v1896 = vadd.f32 %v1892, %v1894
  %v1897 = vadd.f32 %v1893, %v1895
  %v1898 = vmax.f32 %v1896, 1e-08
  %v1899 = vmax.f32 %v1897, 1e-08
  %v1900 = vrsqrt.pop %v1898
  %v1901 = vmul.f32 %v1898, %v1900
  %vm1902 = vcmp.eq.f32.partialorder %v1898, inf
  %v1903 = vsel %vm1902, %v1898, %v1901
  %vm1904 = vcmp.eq.f32.partialorder %v1898, 0.0
  %v1905 = vand.u32 %v1898, 2147483648
  %v1906 = vsel %vm1904, %v1905, %v1903
  %v1907 = vrsqrt.pop %v1899
  %v1908 = vmul.f32 %v1899, %v1907
  %vm1909 = vcmp.eq.f32.partialorder %v1899, inf
  %v1910 = vsel %vm1909, %v1899, %v1908
  %vm1911 = vcmp.eq.f32.partialorder %v1899, 0.0
  %v1912 = vand.u32 %v1899, 2147483648
  %v1913 = vsel %vm1911, %v1912, %v1910
  %v1914 = vxor.u32 %v1906, 2147483648
  %v1915 = vxor.u32 %v1913, 2147483648
  %v1916 = vmul.f32 %v1914, 1.442695
  %v1917 = vpow.pop %v1916
  %v1918 = vmul.f32 %v1915, 1.442695
  %v1919 = vpow.pop %v1918
  %v1920 = vadd.f32 %v1917, 1.0
  %v1921 = vadd.f32 %v1919, 1.0
  %v1922 = vrcp.pop %v1920
  %v1923 = vmul.f32 1.0, %v1922
  %v1924 = vrcp.pop %v1921
  %v1925 = vmul.f32 1.0, %v1924
  %v1926 = vmul.f32 %v1866, %v1923
  %v1927 = vmul.f32 %v1869, %v1925
  %v1928 = vmul.f32 %v1874, %v1923
  %v1929 = vmul.f32 %v1877, %v1925
  %v1930 = vmul.f32 %v1882, %v1923
  %v1931 = vmul.f32 %v1885, %v1925
  %v1932 = vmax.f32 %v1808, 0.0
  %v1933 = vmax.f32 %v1811, 0.0
  %v1934 = vld [vmem:[%s4 + $0x90] sm:$0xf]
  %v1935 = vpack.c.bf16 %v1927, %v1926
  %v1936 = vpack.c.bf16 %v1929, %v1928
  %v1937 = vpack.c.bf16 %v1931, %v1930
  %v1939 = vsel %vm1818, %v1935, 0
  %v1942 = vsel %vm1818, %v1936, 0
  %v1945 = vsel %vm1818, %v1937, 0
  %v1948 = vsel %vm1769, %v1934, 0
  %1950 = vmatprep.subr.bf16.mxu0 0
  %1951 = vmatpush1.bf16.msra.mxu0 %v1948
  %1952 = vmatprep.subr.bf16.mxu0 0
  %1953 = vmatpush1.bf16.msra.mxu0 0
  %1954 = vmatprep.subr.bf16.mxu0 0
  %1955 = vmatpush1.bf16.msra.mxu0 0
  %1956 = vmatprep.subr.bf16.mxu0 0
  %1957 = vmatpush1.bf16.msra.mxu0 0
  %1958 = vmatprep.subr.bf16.mxu0 0
  %1959 = vmatpush1.bf16.msra.mxu0 0
  %1960 = vmatprep.subr.bf16.mxu0 0
  %1961 = vmatpush1.bf16.msra.mxu0 0
  %1962 = vmatprep.subr.bf16.mxu0 0
  %1963 = vmatpush1.bf16.msra.mxu0 0
  %1964 = vmatprep.subr.bf16.mxu0 0
  %1965 = vmatpush1.bf16.msra.mxu0 0
  %1966 = vmatprep.subr.bf16.mxu0 0
  %1967 = vmatpush1.bf16.msra.mxu0 0
  %1968 = vmatprep.subr.bf16.mxu0 0
  %1969 = vmatpush1.bf16.msra.mxu0 0
  %1970 = vmatprep.subr.bf16.mxu0 0
  %1971 = vmatpush1.bf16.msra.mxu0 0
  %1972 = vmatprep.subr.bf16.mxu0 0
  %1973 = vmatpush1.bf16.msra.mxu0 0
  %1974 = vmatprep.subr.bf16.mxu0 0
  %1975 = vmatpush1.bf16.msra.mxu0 0
  %1976 = vmatprep.subr.bf16.mxu0 0
  %1977 = vmatpush1.bf16.msra.mxu0 0
  %1978 = vmatprep.subr.bf16.mxu0 0
  %1979 = vmatpush1.bf16.msra.mxu0 0
  %1980 = vmatprep.subr.bf16.mxu0 0
  %1981 = vmatpush1.bf16.msra.mxu0 0
  %1982 = vmatprep.mubr.bf16.mxu0 0
  %1983 = vmatmul.mubr.bf16.gmra.mrb[0].mxu0 %v1939
  %v1984 = vpop.f32.mrb[0].mxu0
  %v1985 = vadd.f32 0.0, %v1984
  %v1986 = vpop.f32.mrb[0].mxu0
  %v1987 = vpop.f32.mrb[0].mxu0
  %v1988 = vadd.f32 0.0, %v1987
  %v1989 = vpop.f32.mrb[0].mxu0
  %1990 = vmatprep.mubr.bf16.mxu0 0
  %1991 = vmatmul.mubr.bf16.gmra.mrb[0].mxu0 %v1942
  %v1992 = vpop.f32.mrb[0].mxu0
  %v1993 = vadd.f32 0.0, %v1992
  %v1994 = vpop.f32.mrb[0].mxu0
  %v1995 = vpop.f32.mrb[0].mxu0
  %v1996 = vadd.f32 0.0, %v1995
  %v1997 = vpop.f32.mrb[0].mxu0
  %1998 = vmatprep.mubr.bf16.mxu0 0
  %1999 = vmatmul.mubr.bf16.gmra.mrb[0].mxu0 %v1945
  %v2000 = vpop.f32.mrb[0].mxu0
  %v2001 = vadd.f32 0.0, %v2000
  %v2002 = vpop.f32.mrb[0].mxu0
  %v2003 = vpop.f32.mrb[0].mxu0
  %v2004 = vadd.f32 0.0, %v2003
  %v2005 = vpop.f32.mrb[0].mxu0
  %2006 = vdwg.mxu0
  %v2007 = vmul.f32 %v1985, %v1985
  %v2008 = vmul.f32 %v1988, %v1988
  %v2009 = vmul.f32 %v1993, %v1993
  %v2010 = vmul.f32 %v1996, %v1996
  %v2011 = vadd.f32 %v2007, %v2009
  %v2012 = vadd.f32 %v2008, %v2010
  %v2013 = vmul.f32 %v2001, %v2001
  %v2014 = vmul.f32 %v2004, %v2004
  %v2015 = vadd.f32 %v2011, %v2013
  %v2016 = vadd.f32 %v2012, %v2014
  %v2017 = vmax.f32 %v2015, 1e-08
  %v2018 = vmax.f32 %v2016, 1e-08
  %v2019 = vrsqrt.pop %v2017
  %v2020 = vmul.f32 %v2017, %v2019
  %vm2021 = vcmp.eq.f32.partialorder %v2017, inf
  %v2022 = vsel %vm2021, %v2017, %v2020
  %vm2023 = vcmp.eq.f32.partialorder %v2017, 0.0
  %v2024 = vand.u32 %v2017, 2147483648
  %v2025 = vsel %vm2023, %v2024, %v2022
  %v2026 = vrsqrt.pop %v2018
  %v2027 = vmul.f32 %v2018, %v2026
  %vm2028 = vcmp.eq.f32.partialorder %v2018, inf
  %v2029 = vsel %vm2028, %v2018, %v2027
  %vm2030 = vcmp.eq.f32.partialorder %v2018, 0.0
  %v2031 = vand.u32 %v2018, 2147483648
  %v2032 = vsel %vm2030, %v2031, %v2029
  %v2033 = vpack.c.bf16 %v1933, %v1932
  %v2034 = vpack.c.bf16 %v2032, %v2025
  %2036 = vrot.lane.b32.xlu0 %v2034, 64
  %v2037 = vpop.permute.xlu0 %2036
  %vm2038 = vcmask 523264
  %v2041 = vsel %vm2038, %v2033, %v2037
  %v2042 = vld [vmem:[%s4 + $0x98] sm:$0xf]
  %v2043 = vld [vmem:[%s4 + $0x9c] sm:$0xf]
  %v2044 = vld [vmem:[%s4 + $0xa0] sm:$0xf]
  %v2045 = vld [vmem:[%s4 + $0xa4] sm:$0xf]
  %v2046 = vld [vmem:[%s4 + $0xa8] sm:$0xf]
  %v2047 = vld [vmem:[%s4 + $0xac] sm:$0xf]
  %v2048 = vld [vmem:[%s4 + $0xb0] sm:$0xf]
  %v2049 = vld [vmem:[%s4 + $0xb4] sm:$0xf]
  %v2050 = vld [vmem:[%s4 + $0xb8] sm:$0xf]
  %v2051 = vld [vmem:[%s5 + $0x4] sm:$0x1]
  %v2052 = vlaneseq
  %v2053 = vshrl.u32 %v2052, 7
  %v2054 = vsub.s32 0, %v2053
  %v2055 = vrot.slane %v2051, %v2054
  %v2065 = vunpack.c.l.b16 %v2042
  %v2066 = vunpack.c.l.b16 %v2043
  %v2067 = vunpack.c.l.b16 %v2044
  %v2068 = vunpack.c.l.b16 %v2045
  %v2069 = vunpack.c.l.b16 %v2046
  %v2070 = vunpack.c.l.b16 %v2047
  %v2071 = vunpack.c.l.b16 %v2048
  %v2072 = vunpack.c.l.b16 %v2049
  %v2073 = vunpack.c.l.b16 %v2050
  %v2074 = vpack.c.b16 %v2066, %v2065
  %v2075 = vpack.c.b16 %v2068, %v2067
  %v2076 = vpack.c.b16 %v2070, %v2069
  %v2077 = vpack.c.b16 %v2072, %v2071
  %v2078 = vpack.c.b16 %v2073, %v2073
  %vm2083 = vcmask 588800
  %v2084 = vsel %vm2083, %v2041, 0
  %v2087 = vsel %vm1769, %v2078, 0
  %2089 = vmatprep.subr.bf16.mxu0 0
  %2090 = vmatpush1.bf16.msra.mxu0 %v2074
  %2091 = vmatprep.subr.bf16.mxu0 0
  %2092 = vmatpush1.bf16.msra.mxu0 %v2075
  %2093 = vmatprep.subr.bf16.mxu0 0
  %2094 = vmatpush1.bf16.msra.mxu0 %v2076
  %2095 = vmatprep.subr.bf16.mxu0 0
  %2096 = vmatpush1.bf16.msra.mxu0 %v2077
  %2097 = vmatprep.subr.bf16.mxu0 0
  %2098 = vmatpush1.bf16.msra.mxu0 %v2087
  %2099 = vmatprep.subr.bf16.mxu0 0
  %2100 = vmatpush1.bf16.msra.mxu0 0
  %2101 = vmatprep.subr.bf16.mxu0 0
  %2102 = vmatpush1.bf16.msra.mxu0 0
  %2103 = vmatprep.subr.bf16.mxu0 0
  %2104 = vmatpush1.bf16.msra.mxu0 0
  %2105 = vmatprep.subr.bf16.mxu0 0
  %2106 = vmatpush1.bf16.msra.mxu0 0
  %2107 = vmatprep.subr.bf16.mxu0 0
  %2108 = vmatpush1.bf16.msra.mxu0 0
  %2109 = vmatprep.subr.bf16.mxu0 0
  %2110 = vmatpush1.bf16.msra.mxu0 0
  %2111 = vmatprep.subr.bf16.mxu0 0
  %2112 = vmatpush1.bf16.msra.mxu0 0
  %2113 = vmatprep.subr.bf16.mxu0 0
  %2114 = vmatpush1.bf16.msra.mxu0 0
  %2115 = vmatprep.subr.bf16.mxu0 0
  %2116 = vmatpush1.bf16.msra.mxu0 0
  %2117 = vmatprep.subr.bf16.mxu0 0
  %2118 = vmatpush1.bf16.msra.mxu0 0
  %2119 = vmatprep.subr.bf16.mxu0 0
  %2120 = vmatpush1.bf16.msra.mxu0 0
  %2121 = vmatprep.mubr.bf16.mxu0 0
  %2122 = vmatmul.mubr.bf16.gmra.mrb[0].mxu0 %v2084
  %v2123 = vpop.f32.mrb[0].mxu0
  %v2124 = vadd.f32 %v2055, %v2123
  %v2125 = vpop.f32.mrb[0].mxu0
  %v2126 = vpop.f32.mrb[0].mxu0
  %v2127 = vadd.f32 %v2055, %v2126
  %v2128 = vpop.f32.mrb[0].mxu0
  %2129 = vdwg.mxu0
  %v2130 = vld [vmem:[%s4 + $0xc0] sm:$0xf]
  %v2131 = vpack.c.bf16 %v1988, %v1985
  %v2132 = vpack.c.bf16 %v1996, %v1993
  %v2133 = vpack.c.bf16 %v2004, %v2001
  %v2135 = vsel %vm1818, %v2131, 0
  %v2138 = vsel %vm1818, %v2132, 0
  %v2141 = vsel %vm1818, %v2133, 0
  %v2144 = vsel %vm1769, %v2130, 0
  %2146 = vmatprep.subr.bf16.mxu0 0
  %2147 = vmatpush1.bf16.msra.mxu0 %v2144
  %2148 = vmatprep.subr.bf16.mxu0 0
  %2149 = vmatpush1.bf16.msra.mxu0 0
  %2150 = vmatprep.subr.bf16.mxu0 0
  %2151 = vmatpush1.bf16.msra.mxu0 0
  %2152 = vmatprep.subr.bf16.mxu0 0
  %2153 = vmatpush1.bf16.msra.mxu0 0
  %2154 = vmatprep.subr.bf16.mxu0 0
  %2155 = vmatpush1.bf16.msra.mxu0 0
  %2156 = vmatprep.subr.bf16.mxu0 0
  %2157 = vmatpush1.bf16.msra.mxu0 0
  %2158 = vmatprep.subr.bf16.mxu0 0
  %2159 = vmatpush1.bf16.msra.mxu0 0
  %2160 = vmatprep.subr.bf16.mxu0 0
  %2161 = vmatpush1.bf16.msra.mxu0 0
  %2162 = vmatprep.subr.bf16.mxu0 0
  %2163 = vmatpush1.bf16.msra.mxu0 0
  %2164 = vmatprep.subr.bf16.mxu0 0
  %2165 = vmatpush1.bf16.msra.mxu0 0
  %2166 = vmatprep.subr.bf16.mxu0 0
  %2167 = vmatpush1.bf16.msra.mxu0 0
  %2168 = vmatprep.subr.bf16.mxu0 0
  %2169 = vmatpush1.bf16.msra.mxu0 0
  %2170 = vmatprep.subr.bf16.mxu0 0
  %2171 = vmatpush1.bf16.msra.mxu0 0
  %2172 = vmatprep.subr.bf16.mxu0 0
  %2173 = vmatpush1.bf16.msra.mxu0 0
  %2174 = vmatprep.subr.bf16.mxu0 0
  %2175 = vmatpush1.bf16.msra.mxu0 0
  %2176 = vmatprep.subr.bf16.mxu0 0
  %2177 = vmatpush1.bf16.msra.mxu0 0
  %2178 = vmatprep.mubr.bf16.mxu0 0
  %2179 = vmatmul.mubr.bf16.gmra.mrb[0].mxu0 %v2135
  %v2180 = vpop.f32.mrb[0].mxu0
  %v2181 = vadd.f32 0.0, %v2180
  %v2182 = vpop.f32.mrb[0].mxu0
  %v2183 = vpop.f32.mrb[0].mxu0
  %v2184 = vadd.f32 0.0, %v2183
  %v2185 = vpop.f32.mrb[0].mxu0
  %2186 = vmatprep.mubr.bf16.mxu0 0
  %2187 = vmatmul.mubr.bf16.gmra.mrb[0].mxu0 %v2138
  %v2188 = vpop.f32.mrb[0].mxu0
  %v2189 = vadd.f32 0.0, %v2188
  %v2190 = vpop.f32.mrb[0].mxu0
  %v2191 = vpop.f32.mrb[0].mxu0
  %v2192 = vadd.f32 0.0, %v2191
  %v2193 = vpop.f32.mrb[0].mxu0
  %2194 = vmatprep.mubr.bf16.mxu0 0
  %2195 = vmatmul.mubr.bf16.gmra.mrb[0].mxu0 %v2141
  %v2196 = vpop.f32.mrb[0].mxu0
  %v2197 = vadd.f32 0.0, %v2196
  %v2198 = vpop.f32.mrb[0].mxu0
  %v2199 = vpop.f32.mrb[0].mxu0
  %v2200 = vadd.f32 0.0, %v2199
  %v2201 = vpop.f32.mrb[0].mxu0
  %2202 = vdwg.mxu0
  %v2203 = vadd.f32 %v1612, %v2124
  %v2204 = vadd.f32 %v1613, %v2127
  %v2205 = vadd.f32 %v1637, %v2181
  %v2206 = vadd.f32 %v1638, %v2184
  %v2207 = vadd.f32 %v1639, %v2189
  %v2208 = vadd.f32 %v1640, %v2192
  %v2209 = vadd.f32 %v1641, %v2197
  %v2210 = vadd.f32 %v1642, %v2200
  %v2211 = vsel %vm729, %v2203, 0.0
  %2212 = vadd.xlane.f32.xlu0 %v2211
  %v2213 = vpop.xlane.xlu0 %2212
  %v2214 = vsel %vm729, %v2204, 0.0
  %2215 = vadd.xlane.f32.xlu0 %v2214
  %v2216 = vpop.xlane.xlu0 %2215
  %v2217 = vmul.f32 %v2213, %v1579
  %v2218 = vmul.f32 %v2216, %v1579
  %v2219 = vsub.f32 %v2203, %v2217
  %v2220 = vsub.f32 %v2204, %v2218
  %v2221 = vmul.f32 %v2219, %v2219
  %v2222 = vmul.f32 %v2220, %v2220
  %v2223 = vsel %vm729, %v2221, 0.0
  %2224 = vadd.xlane.f32.xlu0 %v2223
  %v2225 = vpop.xlane.xlu0 %2224
  %v2226 = vsel %vm729, %v2222, 0.0
  %2227 = vadd.xlane.f32.xlu0 %v2226
  %v2228 = vpop.xlane.xlu0 %2227
  %v2229 = vmul.f32 %v2225, %v1579
  %v2230 = vmul.f32 %v2228, %v1579
  %v2231 = vadd.f32 %v2229, 1e-05
  %v2232 = vadd.f32 %v2230, 1e-05
  %v2233 = vrsqrt.pop %v2231
  %v2234 = vrsqrt.pop %v2232
  %v2235 = vmul.f32 %v2219, %v2233
  %v2236 = vmul.f32 %v2220, %v2234
  %v2237 = vld [vmem:[%s5 + $0x7] sm:$0x1]
  %v2238 = vlaneseq
  %v2239 = vshrl.u32 %v2238, 7
  %v2240 = vsub.s32 0, %v2239
  %v2241 = vrot.slane %v2237, %v2240
  %v2242 = vmul.f32 %v2235, %v2241
  %v2243 = vmul.f32 %v2236, %v2241
  %v2244 = vld [vmem:[%s5 + $0x8] sm:$0x1]
  %v2245 = vlaneseq
  %v2246 = vshrl.u32 %v2245, 7
  %v2247 = vsub.s32 0, %v2246
  %v2248 = vrot.slane %v2244, %v2247
  %v2249 = vadd.f32 %v2242, %v2248
  %v2250 = vadd.f32 %v2243, %v2248
  %v2251 = vmul.f32 %v2205, %v2205
  %v2252 = vmul.f32 %v2206, %v2206
  %v2253 = vmul.f32 %v2207, %v2207
  %v2254 = vmul.f32 %v2208, %v2208
  %v2255 = vadd.f32 %v2251, %v2253
  %v2256 = vadd.f32 %v2252, %v2254
  %v2257 = vmul.f32 %v2209, %v2209
  %v2258 = vmul.f32 %v2210, %v2210
  %v2259 = vadd.f32 %v2255, %v2257
  %v2260 = vadd.f32 %v2256, %v2258
  %v2261 = vmax.f32 %v2259, 1e-08
  %v2262 = vmax.f32 %v2260, 1e-08
  %v2263 = vsel %vm563, %v2261, 0.0
  %2264 = vadd.xlane.f32.xlu0 %v2263
  %v2265 = vpop.xlane.xlu0 %2264
  %v2266 = vsel %vm563, %v2262, 0.0
  %2267 = vadd.xlane.f32.xlu0 %v2266
  %v2268 = vpop.xlane.xlu0 %2267
  %v2269 = vmul.f32 %v2265, %v1632
  %v2270 = vmul.f32 %v2268, %v1632
  %v2271 = vrsqrt.pop %v2269
  %v2272 = vrsqrt.pop %v2270
  %v2273 = vmul.f32 %v2205, %v2271
  %v2274 = vmul.f32 %v2206, %v2272
  %v2275 = vmul.f32 %v2207, %v2271
  %v2276 = vmul.f32 %v2208, %v2272
  %v2277 = vmul.f32 %v2209, %v2271
  %v2278 = vmul.f32 %v2210, %v2272
  %2281 = vrot.lane.b32.xlu0 %v2273, 16
  %v2282 = vpop.permute.xlu0 %2281
  %2283 = vrot.lane.b32.xlu0 %v2274, 16
  %v2284 = vpop.permute.xlu0 %2283
  %2289 = vrot.lane.b32.xlu0 %v2275, 20
  %v2290 = vpop.permute.xlu0 %2289
  %2291 = vrot.lane.b32.xlu0 %v2276, 20
  %v2292 = vpop.permute.xlu0 %2291
  %2297 = vrot.lane.b32.xlu0 %v2277, 24
  %v2298 = vpop.permute.xlu0 %2297
  %2299 = vrot.lane.b32.xlu0 %v2278, 24
  %v2300 = vpop.permute.xlu0 %2299
  %v2303 = vsel %vm729, %v2249, %v2282
  %v2304 = vsel %vm729, %v2250, %v2284
  %v2305 = vsel %vm753, %v2303, %v2290
  %v2306 = vsel %vm753, %v2304, %v2292
  %v2307 = vsel %vm1426, %v2305, %v2298
  %v2308 = vsel %vm1426, %v2306, %v2300
  %vm2309 = vcmask 228352
  %v2310 = vsel %vm2309, %v2307, 0.0
  %v2311 = vsel %vm2309, %v2308, 0.0
  %2312 = vst [vmem:[%s6] sm:$0xff] %v2310
  %2313 = vst [vmem:[%s6 + $0x8] sm:$0xff] %v2311
  // Predicated region
  $region26: #{gvp_conv_layer.1} parent=0 // pred_check
    _
  $region27: #{gvp_conv_layer.1} parent=0 // pred_check_branch
    %2315 = sbr.rel (0) target = $region29
  $region28: #{gvp_conv_layer.1} parent=0 // pred_region
    _
  $region29: #{gvp_conv_layer.1} parent=0 // pred_fallthru
    _
  // Predicated region
  $region30: #{gvp_conv_layer.1} parent=0 // pred_check
    _
  $region31: #{gvp_conv_layer.1} parent=0 // pred_check_branch
    %2317 = sbr.rel (0) target = $region33
  $region32: #{gvp_conv_layer.1} parent=0 // pred_region
    _
  $region33: #{gvp_conv_layer.1} parent=0 // pred_fallthru
    _

</llo_original>
